<compile_context>
chip_gen: v7x
topology: tpu7x:2x2x1
jax: 0.10.0
libtpu: 0.0.40
codegen_flags: <defaults>
</compile_context>

<pallas_src>
import functools

import jax
import jax.numpy as jnp
from jax.experimental import pallas as pl
from jax.experimental.pallas import tpu as pltpu


# ---------------------------------------------------------------------------
# Kernel
# ---------------------------------------------------------------------------
def _layernorm(x, gamma, beta, eps=1e-5):
    # x: [T, F] f32, gamma/beta: [F] f32
    mean = jnp.mean(x, axis=-1, keepdims=True)
    var = jnp.mean((x - mean) ** 2, axis=-1, keepdims=True)
    xhat = (x - mean) * jax.lax.rsqrt(var + eps)
    return xhat * gamma[None, :] + beta[None, :]


def cross_attention_kernel(
    # inputs (per grid-step tiles; batch dim squeezed)
    embed_ref,      # [tq, E]   bf16
    context_ref,    # [S, C]    bf16
    mask_ref,       # [tq, S]   int8 (1 valid, 0 masked)
    ln_e_g_ref, ln_e_b_ref,     # [1, E] f32
    ln_c_g_ref, ln_c_b_ref,     # [1, C] f32
    wq_ref, bq_ref,             # [E, H*hd] bf16 (scale folded), [1, H*hd] f32 (scale folded)
    wk_ref, bk_ref,             # [C, H*hd] bf16, [1, H*hd] f32
    wv_ref, bv_ref,             # [C, H*vd] bf16, [1, H*vd] f32
    wz_ref, bz_ref,             # [H*vd, E_pad] bf16, [1, E_pad] f32
    # output
    out_ref,                    # [tq, E_pad]
    # scratch
    k_scratch,                  # [S, H*hd] bf16  (cached per batch)
    v_scratch,                  # [S, H*vd] bf16  (cached per batch)
    z_scratch,                  # [tq, H*vd] bf16
    *,
    num_heads: int,
    head_dim: int,
    v_head_dim: int,
):
    f32 = jnp.float32
    bf16 = jnp.bfloat16
    H, hd, vd = num_heads, head_dim, v_head_dim

    # --- context LN + fused K/V projections: once per batch ----------------
    @pl.when(pl.program_id(1) == 0)
    def _():
        c = _layernorm(context_ref[...].astype(f32),
                       ln_c_g_ref[0, :], ln_c_b_ref[0, :]).astype(bf16)   # [S, C]
        k_scratch[...] = (jnp.dot(c, wk_ref[...], preferred_element_type=f32)
                          + bk_ref[...]).astype(bf16)                      # [S, H*hd]
        v_scratch[...] = (jnp.dot(c, wv_ref[...], preferred_element_type=f32)
                          + bv_ref[...]).astype(bf16)                      # [S, H*vd]

    # --- embed LN + fused Q projection (1/sqrt(hd) folded into Wq/bq) ------
    e = _layernorm(embed_ref[...].astype(f32),
                   ln_e_g_ref[0, :], ln_e_b_ref[0, :]).astype(bf16)        # [tq, E]
    q = (jnp.dot(e, wq_ref[...], preferred_element_type=f32)
         + bq_ref[...]).astype(bf16)                                       # [tq, H*hd]

    # --- mask, hoisted out of the head loop ---------------------------------
    valid = mask_ref[...] != 0                                             # [tq, S] bool
    neg = jnp.float32(-1e30)

    k = k_scratch[...]                                                     # [S, H*hd]
    v = v_scratch[...]                                                     # [S, H*vd]

    # --- per-head attention (small per-head matmuls only) -------------------
    for h in range(H):
        qh = q[:, h * hd:(h + 1) * hd]                                     # [tq, hd]
        kh = k[:, h * hd:(h + 1) * hd]                                     # [S, hd]
        vh = v[:, h * vd:(h + 1) * vd]                                     # [S, vd]

        score = jax.lax.dot_general(
            qh, kh, dimension_numbers=(((1,), (1,)), ((), ())),
            preferred_element_type=f32)                                    # [tq, S]
        score = jnp.where(valid, score, neg)
        score = score - jnp.max(score, axis=-1, keepdims=True)
        p = jnp.exp(score)
        p = p * pl.reciprocal(jnp.sum(p, axis=-1, keepdims=True), approx=True)

        zh = jnp.dot(p.astype(bf16), vh, preferred_element_type=f32)       # [tq, vd]
        z_scratch[:, h * vd:(h + 1) * vd] = zh.astype(bf16)

    # --- fused output projection (single matmul, lane-dense store) ----------
    out = jnp.dot(z_scratch[...], wz_ref[...], preferred_element_type=f32) + bz_ref[...]
    out_ref[...] = out.astype(out_ref.dtype)


# ---------------------------------------------------------------------------
# One-time parameter prep (call once, not per forward)
# ---------------------------------------------------------------------------
def prepare_params(raw, *, head_dim, lane=128):
    """bf16 MXU weights, f32 biases, scale folded into Wq/bq, Wz/bz E-padded."""
    f32, bf16 = jnp.float32, jnp.bfloat16
    scale = head_dim ** (-0.5)
    E = raw["wz"].shape[1]
    E_pad = ((E + lane - 1) // lane) * lane
    wz = raw["wz"].astype(f32)
    bz = raw["bz"].astype(f32).reshape(1, -1)
    if E_pad != E:
        wz = jnp.pad(wz, ((0, 0), (0, E_pad - E)))
        bz = jnp.pad(bz, ((0, 0), (0, E_pad - E)))
    return {
        "ln_e_g": raw["ln_e_g"].astype(f32).reshape(1, -1),
        "ln_e_b": raw["ln_e_b"].astype(f32).reshape(1, -1),
        "ln_c_g": raw["ln_c_g"].astype(f32).reshape(1, -1),
        "ln_c_b": raw["ln_c_b"].astype(f32).reshape(1, -1),
        "wq": (raw["wq"].astype(f32) * scale).astype(bf16),
        "bq": (raw["bq"].astype(f32) * scale).reshape(1, -1),
        "wk": raw["wk"].astype(bf16),
        "bk": raw["bk"].astype(f32).reshape(1, -1),
        "wv": raw["wv"].astype(bf16),
        "bv": raw["bv"].astype(f32).reshape(1, -1),
        "wz": wz.astype(bf16),
        "bz": bz,
    }


def _vmem_limit_bytes():
    # Generation-gated: 64 MiB on v5e/v6e (128 MiB physical), ~48 MiB on v7x.
    try:
        cap = int(pltpu.get_tpu_info().vmem_capacity_bytes)
    except Exception:
        cap = 64 * 1024 * 1024
    return int(min(64 * 1024 * 1024, cap * 3 // 4))


# ---------------------------------------------------------------------------
# Wrapper
# ---------------------------------------------------------------------------
def cross_attention(embed, context, prepped, mask=None, *,
                    num_heads, head_dim, v_head_dim, q_tile=256):
    """embed: [B, T, E], context: [B, S, C], mask: [B, T, S] (bool/int) or None."""
    B, T, E = embed.shape
    _, S, C = context.shape
    H, hd, vd = num_heads, head_dim, v_head_dim
    bf16 = jnp.bfloat16
    out_dtype = embed.dtype
    E_pad = prepped["wz"].shape[1]

    # bf16 activation DMA (half the HBM traffic / VMEM residency).
    embed_b = embed.astype(bf16)
    context_b = context.astype(bf16)

    # int8 mask: 4x less HBM/VMEM traffic than f32.
    if mask is None:
        mask_i8 = jnp.ones((B, T, S), jnp.int8)
    else:
        mask_i8 = mask.astype(jnp.int8)

    # Query tiling: full T for small T, q_tile-row tiles otherwise.
    tq = T if T <= q_tile else q_tile
    grid = (B, pl.cdiv(T, tq))

    def per_batch_spec(r, c):
        return pl.BlockSpec((pl.Squeezed(), r, c), lambda b, t: (b, t, 0))

    context_spec = pl.BlockSpec((pl.Squeezed(), S, C), lambda b, t: (b, 0, 0))

    def shared2(r, c):
        return pl.BlockSpec((r, c), lambda b, t: (0, 0))

    in_specs = [
        per_batch_spec(tq, E),          # embed
        context_spec,                   # context (full S per step, DMA'd once per batch)
        per_batch_spec(tq, S),          # mask (int8)
        shared2(1, E), shared2(1, E),   # ln_e gamma, beta
        shared2(1, C), shared2(1, C),   # ln_c gamma, beta
        shared2(E, H * hd), shared2(1, H * hd),   # Wq, bq (fused heads, scale folded)
        shared2(C, H * hd), shared2(1, H * hd),   # Wk, bk
        shared2(C, H * vd), shared2(1, H * vd),   # Wv, bv
        shared2(H * vd, E_pad), shared2(1, E_pad),  # Wz, bz (lane-dense E_pad)
    ]
    out_spec = pl.BlockSpec((pl.Squeezed(), tq, E_pad), lambda b, t: (b, t, 0))

    kernel = functools.partial(cross_attention_kernel,
                               num_heads=H, head_dim=hd, v_head_dim=vd)

    out = pl.pallas_call(
        kernel,
        out_shape=jax.ShapeDtypeStruct((B, T, E_pad), out_dtype),
        grid_spec=pltpu.PrefetchScalarGridSpec(
            num_scalar_prefetch=0,
            grid=grid,
            in_specs=in_specs,
            out_specs=out_spec,
            scratch_shapes=[
                pltpu.VMEM((S, H * hd), bf16),   # K cache (per batch)
                pltpu.VMEM((S, H * vd), bf16),   # V cache (per batch)
                pltpu.VMEM((tq, H * vd), bf16),  # per-tile flat z
            ],
        ),
        compiler_params=pltpu.CompilerParams(
            # Batch axis parallel (megacore); query-tile axis must be sequential
            # so the per-batch K/V scratch cache is valid.
            dimension_semantics=("parallel", "arbitrary"),
            vmem_limit_bytes=_vmem_limit_bytes(),
        ),
    )(
        embed_b, context_b, mask_i8,
        prepped["ln_e_g"], prepped["ln_e_b"],
        prepped["ln_c_g"], prepped["ln_c_b"],
        prepped["wq"], prepped["bq"],
        prepped["wk"], prepped["bk"],
        prepped["wv"], prepped["bv"],
        prepped["wz"], prepped["bz"],
    )
    return out[..., :E] if E_pad != E else out


# ---------------------------------------------------------------------------
# Pure-JAX reference (mirrors the PyTorch module semantics, f32 end-to-end)
# ---------------------------------------------------------------------------
def reference(embed, context, params, mask=None, *, num_heads, head_dim, v_head_dim):
    def ln(x, g, b, eps=1e-5):
        m = jnp.mean(x, axis=-1, keepdims=True)
        v = jnp.mean((x - m) ** 2, axis=-1, keepdims=True)
        return (x - m) * jax.lax.rsqrt(v + eps) * g + b

    e = ln(embed, params["ln_e_g"][0], params["ln_e_b"][0])
    c = ln(context, params["ln_c_g"][0], params["ln_c_b"][0])
    flat_q = e @ params["wq"] + params["bq"][0]
    flat_k = c @ params["wk"] + params["bk"][0]
    flat_v = c @ params["wv"] + params["bv"][0]
    B, T, _ = flat_q.shape
    S = flat_k.shape[1]
    q = flat_q.reshape(B, T, num_heads, head_dim)
    k = flat_k.reshape(B, S, num_heads, head_dim)
    v = flat_v.reshape(B, S, num_heads, v_head_dim)
    score = jnp.einsum("bthd,bThd->bhtT", q, k) * head_dim ** (-0.5)
    if mask is not None:
        max_neg = -jnp.finfo(score.dtype).max
        score = jnp.where(mask[:, None, :, :], score, max_neg)
    p = jax.nn.softmax(score, axis=-1)
    z = jnp.einsum("bhtT,bThd->bthd", p, v).reshape(B, T, num_heads * v_head_dim)
    return z @ params["wz"] + params["bz"][0]


# ---------------------------------------------------------------------------
# Main
# ---------------------------------------------------------------------------
if __name__ == "__main__":
    B, T, S = 2, 8, 16            # batch, query seq, context seq
    embed_dim, context_dim = 32, 24
    num_heads, head_dim, v_head_dim = 4, 16, 16
    mhd, mvd = num_heads * head_dim, num_heads * v_head_dim

    key = jax.random.PRNGKey(0)
    ks = jax.random.split(key, 12)

    embed = jax.random.normal(ks[0], (B, T, embed_dim), jnp.float32)
    context = jax.random.normal(ks[1], (B, S, context_dim), jnp.float32)
    mask = jax.random.uniform(ks[2], (B, T, S)) > 0.2   # bool [B, T, S]

    # Deterministic synthetic parameters (stand-in for nn.Linear / LayerNorm weights).
    params = {
        "ln_e_g": jnp.ones((1, embed_dim), jnp.float32),
        "ln_e_b": jnp.zeros((1, embed_dim), jnp.float32),
        "ln_c_g": jnp.ones((1, context_dim), jnp.float32),
        "ln_c_b": jnp.zeros((1, context_dim), jnp.float32),
        "wq": 0.1 * jax.random.normal(ks[3], (embed_dim, mhd), jnp.float32),
        "bq": 0.1 * jax.random.normal(ks[4], (1, mhd), jnp.float32),
        "wk": 0.1 * jax.random.normal(ks[5], (context_dim, mhd), jnp.float32),
        "bk": 0.1 * jax.random.normal(ks[6], (1, mhd), jnp.float32),
        "wv": 0.1 * jax.random.normal(ks[7], (context_dim, mvd), jnp.float32),
        "bv": 0.1 * jax.random.normal(ks[8], (1, mvd), jnp.float32),
        "wz": 0.1 * jax.random.normal(ks[9], (mvd, embed_dim), jnp.float32),
        "bz": 0.1 * jax.random.normal(ks[10], (1, embed_dim), jnp.float32),
    }

    # One-time weight prep (bf16 cast, scale fold, E padding) - not per forward.
    prepped = prepare_params(params, head_dim=head_dim)

    out = cross_attention(
        embed, context, prepped, mask=mask,
        num_heads=num_heads, head_dim=head_dim, v_head_dim=v_head_dim,
    )
    out = jax.block_until_ready(out)

    ref = reference(
        embed, context, params, mask=mask,
        num_heads=num_heads, head_dim=head_dim, v_head_dim=v_head_dim,
    )
    assert out.shape == (B, T, embed_dim)
    # bf16 activations/weights + approx reciprocal -> loosen tolerance vs f32 reference.
    max_diff = jnp.max(jnp.abs(out - ref))
    assert jnp.allclose(out, ref, atol=5e-2, rtol=5e-2), f"max abs diff = {max_diff}"

    print("KERNEL_OK")
</pallas_src>

<mosaic_0001>
module attributes {stable_mosaic.version = 11 : i64} {
  func.func @cross_attention_kernel(%arg0: i32, %arg1: i32, %arg2: memref<1x8x32xbf16, #tpu.memory_space<vmem>>, %arg3: memref<1x16x24xbf16, #tpu.memory_space<vmem>>, %arg4: memref<1x8x16xi8, #tpu.memory_space<vmem>>, %arg5: memref<1x32xf32, #tpu.memory_space<vmem>>, %arg6: memref<1x32xf32, #tpu.memory_space<vmem>>, %arg7: memref<1x24xf32, #tpu.memory_space<vmem>>, %arg8: memref<1x24xf32, #tpu.memory_space<vmem>>, %arg9: memref<32x64xbf16, #tpu.memory_space<vmem>>, %arg10: memref<1x64xf32, #tpu.memory_space<vmem>>, %arg11: memref<24x64xbf16, #tpu.memory_space<vmem>>, %arg12: memref<1x64xf32, #tpu.memory_space<vmem>>, %arg13: memref<24x64xbf16, #tpu.memory_space<vmem>>, %arg14: memref<1x64xf32, #tpu.memory_space<vmem>>, %arg15: memref<64x128xbf16, #tpu.memory_space<vmem>>, %arg16: memref<1x128xf32, #tpu.memory_space<vmem>>, %arg17: memref<1x8x128xf32, #tpu.memory_space<vmem>>, %arg18: memref<16x64xbf16, #tpu.memory_space<vmem>>, %arg19: memref<16x64xbf16, #tpu.memory_space<vmem>>, %arg20: memref<8x64xbf16, #tpu.memory_space<vmem>>) attributes {dimension_semantics = [#tpu.dimension_semantics<parallel>, #tpu.dimension_semantics<arbitrary>], iteration_bounds = array<i64: 2, 1>, scalar_prefetch = 0 : i64, scratch_operands = 3 : i64, tpu.core_type = #tpu.core_type<tc>, window_params = [{transform_indices = @transform_0, window_bounds = array<i64: 1, 8, 32>}, {transform_indices = @transform_1, window_bounds = array<i64: 1, 16, 24>}, {transform_indices = @transform_2, window_bounds = array<i64: 1, 8, 16>}, {pipeline_mode = #tpu.pipeline_mode<synchronous>, transform_indices = @transform_3, window_bounds = array<i64: 1, 32>}, {pipeline_mode = #tpu.pipeline_mode<synchronous>, transform_indices = @transform_4, window_bounds = array<i64: 1, 32>}, {pipeline_mode = #tpu.pipeline_mode<synchronous>, transform_indices = @transform_5, window_bounds = array<i64: 1, 24>}, {pipeline_mode = #tpu.pipeline_mode<synchronous>, transform_indices = @transform_6, window_bounds = array<i64: 1, 24>}, {pipeline_mode = #tpu.pipeline_mode<synchronous>, transform_indices = @transform_7, window_bounds = array<i64: 32, 64>}, {pipeline_mode = #tpu.pipeline_mode<synchronous>, transform_indices = @transform_8, window_bounds = array<i64: 1, 64>}, {pipeline_mode = #tpu.pipeline_mode<synchronous>, transform_indices = @transform_9, window_bounds = array<i64: 24, 64>}, {pipeline_mode = #tpu.pipeline_mode<synchronous>, transform_indices = @transform_10, window_bounds = array<i64: 1, 64>}, {pipeline_mode = #tpu.pipeline_mode<synchronous>, transform_indices = @transform_11, window_bounds = array<i64: 24, 64>}, {pipeline_mode = #tpu.pipeline_mode<synchronous>, transform_indices = @transform_12, window_bounds = array<i64: 1, 64>}, {pipeline_mode = #tpu.pipeline_mode<synchronous>, transform_indices = @transform_13, window_bounds = array<i64: 64, 128>}, {pipeline_mode = #tpu.pipeline_mode<synchronous>, transform_indices = @transform_14, window_bounds = array<i64: 1, 128>}, {transform_indices = @transform_15, window_bounds = array<i64: 1, 8, 128>}]} {
    %c0_i32 = arith.constant 0 : i32
    %0 = arith.cmpi eq, %arg1, %c0_i32 : i32
    %1 = arith.extui %0 : i1 to i32
    %c0_i32_0 = arith.constant 0 : i32
    %2 = arith.cmpi ne, %1, %c0_i32_0 : i32
    scf.if %2 {
      %c0_58 = arith.constant 0 : index
      %c0_59 = arith.constant 0 : index
      %c0_60 = arith.constant 0 : index
      %136 = vector.load %arg3[%c0_58, %c0_59, %c0_60] : memref<1x16x24xbf16, #tpu.memory_space<vmem>>, vector<1x16x24xbf16>
      %137 = vector.shape_cast %136 : vector<1x16x24xbf16> to vector<16x24xbf16>
      %138 = arith.extf %137 : vector<16x24xbf16> to vector<16x24xf32>
      %c0_61 = arith.constant 0 : index
      %c0_62 = arith.constant 0 : index
      %139 = vector.load %arg7[%c0_61, %c0_62] : memref<1x24xf32, #tpu.memory_space<vmem>>, vector<1x24xf32>
      %140 = vector.shape_cast %139 : vector<1x24xf32> to vector<24xf32>
      %c0_63 = arith.constant 0 : index
      %c0_64 = arith.constant 0 : index
      %141 = vector.load %arg8[%c0_63, %c0_64] : memref<1x24xf32, #tpu.memory_space<vmem>>, vector<1x24xf32>
      %142 = vector.shape_cast %141 : vector<1x24xf32> to vector<24xf32>
      %cst_65 = arith.constant dense<0.000000e+00> : vector<16xf32>
      %143 = vector.multi_reduction <add>, %138, %cst_65 [1] : vector<16x24xf32> to vector<16xf32>
      %144 = vector.shape_cast %143 : vector<16xf32> to vector<16x1xf32>
      %cst_66 = arith.constant 2.400000e+01 : f32
      %145 = vector.broadcast %cst_66 : f32 to vector<16x1xf32>
      %146 = arith.divf %144, %145 : vector<16x1xf32>
      %147 = vector.broadcast %146 : vector<16x1xf32> to vector<16x24xf32>
      %148 = arith.subf %138, %147 : vector<16x24xf32>
      %149 = arith.mulf %148, %148 : vector<16x24xf32>
      %cst_67 = arith.constant dense<0.000000e+00> : vector<16xf32>
      %150 = vector.multi_reduction <add>, %149, %cst_67 [1] : vector<16x24xf32> to vector<16xf32>
      %151 = vector.shape_cast %150 : vector<16xf32> to vector<16x1xf32>
      %cst_68 = arith.constant 2.400000e+01 : f32
      %152 = vector.broadcast %cst_68 : f32 to vector<16x1xf32>
      %153 = arith.divf %151, %152 : vector<16x1xf32>
      %154 = vector.broadcast %146 : vector<16x1xf32> to vector<16x24xf32>
      %155 = arith.subf %138, %154 : vector<16x24xf32>
      %cst_69 = arith.constant 9.99999974E-6 : f32
      %156 = vector.broadcast %cst_69 : f32 to vector<16x1xf32>
      %157 = arith.addf %153, %156 : vector<16x1xf32>
      %158 = math.rsqrt %157 : vector<16x1xf32>
      %159 = vector.broadcast %158 : vector<16x1xf32> to vector<16x24xf32>
      %160 = arith.mulf %155, %159 : vector<16x24xf32>
      %161 = vector.shape_cast %140 : vector<24xf32> to vector<1x24xf32>
      %162 = vector.broadcast %161 : vector<1x24xf32> to vector<16x24xf32>
      %163 = arith.mulf %160, %162 : vector<16x24xf32>
      %164 = vector.shape_cast %142 : vector<24xf32> to vector<1x24xf32>
      %165 = vector.broadcast %164 : vector<1x24xf32> to vector<16x24xf32>
      %166 = arith.addf %163, %165 : vector<16x24xf32>
      %167 = arith.truncf %166 : vector<16x24xf32> to vector<16x24xbf16>
      %c0_70 = arith.constant 0 : index
      %c0_71 = arith.constant 0 : index
      %168 = vector.load %arg11[%c0_70, %c0_71] : memref<24x64xbf16, #tpu.memory_space<vmem>>, vector<24x64xbf16>
      %cst_72 = arith.constant dense<0.000000e+00> : vector<16x64xf32>
      %169 = tpu.matmul %167, %168, %cst_72 {dimension_numbers = #tpu.dot_dimension_numbers<[1], [0], [0], [1], [0, 0, 1, 1], [], []>} : vector<16x24xbf16>, vector<24x64xbf16>, vector<16x64xf32> -> vector<16x64xf32>
      %c0_73 = arith.constant 0 : index
      %c0_74 = arith.constant 0 : index
      %170 = vector.load %arg12[%c0_73, %c0_74] : memref<1x64xf32, #tpu.memory_space<vmem>>, vector<1x64xf32>
      %171 = vector.broadcast %170 : vector<1x64xf32> to vector<16x64xf32>
      %172 = arith.addf %169, %171 : vector<16x64xf32>
      %173 = arith.truncf %172 : vector<16x64xf32> to vector<16x64xbf16>
      %c0_75 = arith.constant 0 : index
      %c0_76 = arith.constant 0 : index
      %174 = vector.load %arg18[%c0_75, %c0_76] : memref<16x64xbf16, #tpu.memory_space<vmem>>, vector<16x64xbf16>
      tpu.vector_store %arg18[%c0_75, %c0_76], %173 {strides = array<i32>} : memref<16x64xbf16, #tpu.memory_space<vmem>>, vector<16x64xbf16>,
      %c0_77 = arith.constant 0 : index
      %c0_78 = arith.constant 0 : index
      %175 = vector.load %arg13[%c0_77, %c0_78] : memref<24x64xbf16, #tpu.memory_space<vmem>>, vector<24x64xbf16>
      %cst_79 = arith.constant dense<0.000000e+00> : vector<16x64xf32>
      %176 = tpu.matmul %167, %175, %cst_79 {dimension_numbers = #tpu.dot_dimension_numbers<[1], [0], [0], [1], [0, 0, 1, 1], [], []>} : vector<16x24xbf16>, vector<24x64xbf16>, vector<16x64xf32> -> vector<16x64xf32>
      %c0_80 = arith.constant 0 : index
      %c0_81 = arith.constant 0 : index
      %177 = vector.load %arg14[%c0_80, %c0_81] : memref<1x64xf32, #tpu.memory_space<vmem>>, vector<1x64xf32>
      %178 = vector.broadcast %177 : vector<1x64xf32> to vector<16x64xf32>
      %179 = arith.addf %176, %178 : vector<16x64xf32>
      %180 = arith.truncf %179 : vector<16x64xf32> to vector<16x64xbf16>
      %c0_82 = arith.constant 0 : index
      %c0_83 = arith.constant 0 : index
      %181 = vector.load %arg19[%c0_82, %c0_83] : memref<16x64xbf16, #tpu.memory_space<vmem>>, vector<16x64xbf16>
      tpu.vector_store %arg19[%c0_82, %c0_83], %180 {strides = array<i32>} : memref<16x64xbf16, #tpu.memory_space<vmem>>, vector<16x64xbf16>,
    } else {
    }
    %c0 = arith.constant 0 : index
    %c0_1 = arith.constant 0 : index
    %c0_2 = arith.constant 0 : index
    %3 = vector.load %arg2[%c0, %c0_1, %c0_2] : memref<1x8x32xbf16, #tpu.memory_space<vmem>>, vector<1x8x32xbf16>
    %4 = vector.shape_cast %3 : vector<1x8x32xbf16> to vector<8x32xbf16>
    %5 = arith.extf %4 : vector<8x32xbf16> to vector<8x32xf32>
    %c0_3 = arith.constant 0 : index
    %c0_4 = arith.constant 0 : index
    %6 = vector.load %arg5[%c0_3, %c0_4] : memref<1x32xf32, #tpu.memory_space<vmem>>, vector<1x32xf32>
    %7 = vector.shape_cast %6 : vector<1x32xf32> to vector<32xf32>
    %c0_5 = arith.constant 0 : index
    %c0_6 = arith.constant 0 : index
    %8 = vector.load %arg6[%c0_5, %c0_6] : memref<1x32xf32, #tpu.memory_space<vmem>>, vector<1x32xf32>
    %9 = vector.shape_cast %8 : vector<1x32xf32> to vector<32xf32>
    %cst = arith.constant dense<0.000000e+00> : vector<8xf32>
    %10 = vector.multi_reduction <add>, %5, %cst [1] : vector<8x32xf32> to vector<8xf32>
    %11 = vector.shape_cast %10 : vector<8xf32> to vector<8x1xf32>
    %cst_7 = arith.constant 3.200000e+01 : f32
    %12 = vector.broadcast %cst_7 : f32 to vector<8x1xf32>
    %13 = arith.divf %11, %12 : vector<8x1xf32>
    %14 = vector.broadcast %13 : vector<8x1xf32> to vector<8x32xf32>
    %15 = arith.subf %5, %14 : vector<8x32xf32>
    %16 = arith.mulf %15, %15 : vector<8x32xf32>
    %cst_8 = arith.constant dense<0.000000e+00> : vector<8xf32>
    %17 = vector.multi_reduction <add>, %16, %cst_8 [1] : vector<8x32xf32> to vector<8xf32>
    %18 = vector.shape_cast %17 : vector<8xf32> to vector<8x1xf32>
    %cst_9 = arith.constant 3.200000e+01 : f32
    %19 = vector.broadcast %cst_9 : f32 to vector<8x1xf32>
    %20 = arith.divf %18, %19 : vector<8x1xf32>
    %21 = vector.broadcast %13 : vector<8x1xf32> to vector<8x32xf32>
    %22 = arith.subf %5, %21 : vector<8x32xf32>
    %cst_10 = arith.constant 9.99999974E-6 : f32
    %23 = vector.broadcast %cst_10 : f32 to vector<8x1xf32>
    %24 = arith.addf %20, %23 : vector<8x1xf32>
    %25 = math.rsqrt %24 : vector<8x1xf32>
    %26 = vector.broadcast %25 : vector<8x1xf32> to vector<8x32xf32>
    %27 = arith.mulf %22, %26 : vector<8x32xf32>
    %28 = vector.shape_cast %7 : vector<32xf32> to vector<1x32xf32>
    %29 = vector.broadcast %28 : vector<1x32xf32> to vector<8x32xf32>
    %30 = arith.mulf %27, %29 : vector<8x32xf32>
    %31 = vector.shape_cast %9 : vector<32xf32> to vector<1x32xf32>
    %32 = vector.broadcast %31 : vector<1x32xf32> to vector<8x32xf32>
    %33 = arith.addf %30, %32 : vector<8x32xf32>
    %34 = arith.truncf %33 : vector<8x32xf32> to vector<8x32xbf16>
    %c0_11 = arith.constant 0 : index
    %c0_12 = arith.constant 0 : index
    %35 = vector.load %arg9[%c0_11, %c0_12] : memref<32x64xbf16, #tpu.memory_space<vmem>>, vector<32x64xbf16>
    %cst_13 = arith.constant dense<0.000000e+00> : vector<8x64xf32>
    %36 = tpu.matmul %34, %35, %cst_13 {dimension_numbers = #tpu.dot_dimension_numbers<[1], [0], [0], [1], [0, 0, 1, 1], [], []>} : vector<8x32xbf16>, vector<32x64xbf16>, vector<8x64xf32> -> vector<8x64xf32>
    %c0_14 = arith.constant 0 : index
    %c0_15 = arith.constant 0 : index
    %37 = vector.load %arg10[%c0_14, %c0_15] : memref<1x64xf32, #tpu.memory_space<vmem>>, vector<1x64xf32>
    %38 = vector.broadcast %37 : vector<1x64xf32> to vector<8x64xf32>
    %39 = arith.addf %36, %38 : vector<8x64xf32>
    %40 = arith.truncf %39 : vector<8x64xf32> to vector<8x64xbf16>
    %c0_16 = arith.constant 0 : index
    %c0_17 = arith.constant 0 : index
    %c0_18 = arith.constant 0 : index
    %41 = vector.load %arg4[%c0_16, %c0_17, %c0_18] : memref<1x8x16xi8, #tpu.memory_space<vmem>>, vector<1x8x16xi8>
    %42 = vector.shape_cast %41 : vector<1x8x16xi8> to vector<8x16xi8>
    %c0_i8 = arith.constant 0 : i8
    %43 = vector.broadcast %c0_i8 : i8 to vector<8x16xi8>
    %44 = arith.cmpi ne, %42, %43 : vector<8x16xi8>
    %c0_19 = arith.constant 0 : index
    %c0_20 = arith.constant 0 : index
    %45 = vector.load %arg18[%c0_19, %c0_20] : memref<16x64xbf16, #tpu.memory_space<vmem>>, vector<16x64xbf16>
    %c0_21 = arith.constant 0 : index
    %c0_22 = arith.constant 0 : index
    %46 = vector.load %arg19[%c0_21, %c0_22] : memref<16x64xbf16, #tpu.memory_space<vmem>>, vector<16x64xbf16>
    %47 = vector.extract_strided_slice %40 {offsets = [0, 0], sizes = [8, 16], strides = [1, 1]} : vector<8x64xbf16> to vector<8x16xbf16>
    %48 = vector.extract_strided_slice %45 {offsets = [0, 0], sizes = [16, 16], strides = [1, 1]} : vector<16x64xbf16> to vector<16x16xbf16>
    %49 = vector.extract_strided_slice %46 {offsets = [0, 0], sizes = [16, 16], strides = [1, 1]} : vector<16x64xbf16> to vector<16x16xbf16>
    %cst_23 = arith.constant dense<0.000000e+00> : vector<8x16xf32>
    %50 = tpu.matmul %47, %48, %cst_23 {dimension_numbers = #tpu.dot_dimension_numbers<[1], [1], [0], [0], [0, 0, 1, 0], [], []>} : vector<8x16xbf16>, vector<16x16xbf16>, vector<8x16xf32> -> vector<8x16xf32>
    %cst_24 = arith.constant -1.000000e+30 : f32
    %51 = vector.broadcast %cst_24 : f32 to vector<8x16xf32>
    %52 = arith.select %44, %50, %51 : vector<8x16xi1>, vector<8x16xf32>
    %cst_25 = arith.constant dense<0xFF800000> : vector<8xf32>
    %53 = vector.multi_reduction <maximumf>, %52, %cst_25 [1] : vector<8x16xf32> to vector<8xf32>
    %54 = vector.shape_cast %53 : vector<8xf32> to vector<8x1xf32>
    %55 = vector.broadcast %54 : vector<8x1xf32> to vector<8x16xf32>
    %56 = arith.subf %52, %55 : vector<8x16xf32>
    %57 = math.exp %56 : vector<8x16xf32>
    %cst_26 = arith.constant dense<0.000000e+00> : vector<8xf32>
    %58 = vector.multi_reduction <add>, %57, %cst_26 [1] : vector<8x16xf32> to vector<8xf32>
    %59 = vector.shape_cast %58 : vector<8xf32> to vector<8x1xf32>
    %60 = tpu.reciprocal %59 {approx = true} : vector<8x1xf32> -> vector<8x1xf32>
    %61 = vector.broadcast %60 : vector<8x1xf32> to vector<8x16xf32>
    %62 = arith.mulf %57, %61 : vector<8x16xf32>
    %63 = arith.truncf %62 : vector<8x16xf32> to vector<8x16xbf16>
    %cst_27 = arith.constant dense<0.000000e+00> : vector<8x16xf32>
    %64 = tpu.matmul %63, %49, %cst_27 {dimension_numbers = #tpu.dot_dimension_numbers<[1], [0], [0], [1], [0, 0, 1, 1], [], []>} : vector<8x16xbf16>, vector<16x16xbf16>, vector<8x16xf32> -> vector<8x16xf32>
    %65 = arith.truncf %64 : vector<8x16xf32> to vector<8x16xbf16>
    %c0_28 = arith.constant 0 : index
    %c0_29 = arith.constant 0 : index
    %66 = vector.load %arg20[%c0_28, %c0_29] : memref<8x64xbf16, #tpu.memory_space<vmem>>, vector<8x16xbf16>
    tpu.vector_store %arg20[%c0_28, %c0_29], %65 {strides = array<i32>} : memref<8x64xbf16, #tpu.memory_space<vmem>>, vector<8x16xbf16>,
    %67 = vector.extract_strided_slice %40 {offsets = [0, 16], sizes = [8, 16], strides = [1, 1]} : vector<8x64xbf16> to vector<8x16xbf16>
    %68 = vector.extract_strided_slice %45 {offsets = [0, 16], sizes = [16, 16], strides = [1, 1]} : vector<16x64xbf16> to vector<16x16xbf16>
    %69 = vector.extract_strided_slice %46 {offsets = [0, 16], sizes = [16, 16], strides = [1, 1]} : vector<16x64xbf16> to vector<16x16xbf16>
    %cst_30 = arith.constant dense<0.000000e+00> : vector<8x16xf32>
    %70 = tpu.matmul %67, %68, %cst_30 {dimension_numbers = #tpu.dot_dimension_numbers<[1], [1], [0], [0], [0, 0, 1, 0], [], []>} : vector<8x16xbf16>, vector<16x16xbf16>, vector<8x16xf32> -> vector<8x16xf32>
    %cst_31 = arith.constant -1.000000e+30 : f32
    %71 = vector.broadcast %cst_31 : f32 to vector<8x16xf32>
    %72 = arith.select %44, %70, %71 : vector<8x16xi1>, vector<8x16xf32>
    %cst_32 = arith.constant dense<0xFF800000> : vector<8xf32>
    %73 = vector.multi_reduction <maximumf>, %72, %cst_32 [1] : vector<8x16xf32> to vector<8xf32>
    %74 = vector.shape_cast %73 : vector<8xf32> to vector<8x1xf32>
    %75 = vector.broadcast %74 : vector<8x1xf32> to vector<8x16xf32>
    %76 = arith.subf %72, %75 : vector<8x16xf32>
    %77 = math.exp %76 : vector<8x16xf32>
    %cst_33 = arith.constant dense<0.000000e+00> : vector<8xf32>
    %78 = vector.multi_reduction <add>, %77, %cst_33 [1] : vector<8x16xf32> to vector<8xf32>
    %79 = vector.shape_cast %78 : vector<8xf32> to vector<8x1xf32>
    %80 = tpu.reciprocal %79 {approx = true} : vector<8x1xf32> -> vector<8x1xf32>
    %81 = vector.broadcast %80 : vector<8x1xf32> to vector<8x16xf32>
    %82 = arith.mulf %77, %81 : vector<8x16xf32>
    %83 = arith.truncf %82 : vector<8x16xf32> to vector<8x16xbf16>
    %cst_34 = arith.constant dense<0.000000e+00> : vector<8x16xf32>
    %84 = tpu.matmul %83, %69, %cst_34 {dimension_numbers = #tpu.dot_dimension_numbers<[1], [0], [0], [1], [0, 0, 1, 1], [], []>} : vector<8x16xbf16>, vector<16x16xbf16>, vector<8x16xf32> -> vector<8x16xf32>
    %85 = arith.truncf %84 : vector<8x16xf32> to vector<8x16xbf16>
    %c0_35 = arith.constant 0 : index
    %c16 = arith.constant 16 : index
    %86 = vector.load %arg20[%c0_35, %c16] : memref<8x64xbf16, #tpu.memory_space<vmem>>, vector<8x16xbf16>
    tpu.vector_store %arg20[%c0_35, %c16], %85 {strides = array<i32>} : memref<8x64xbf16, #tpu.memory_space<vmem>>, vector<8x16xbf16>,
    %87 = vector.extract_strided_slice %40 {offsets = [0, 32], sizes = [8, 16], strides = [1, 1]} : vector<8x64xbf16> to vector<8x16xbf16>
    %88 = vector.extract_strided_slice %45 {offsets = [0, 32], sizes = [16, 16], strides = [1, 1]} : vector<16x64xbf16> to vector<16x16xbf16>
    %89 = vector.extract_strided_slice %46 {offsets = [0, 32], sizes = [16, 16], strides = [1, 1]} : vector<16x64xbf16> to vector<16x16xbf16>
    %cst_36 = arith.constant dense<0.000000e+00> : vector<8x16xf32>
    %90 = tpu.matmul %87, %88, %cst_36 {dimension_numbers = #tpu.dot_dimension_numbers<[1], [1], [0], [0], [0, 0, 1, 0], [], []>} : vector<8x16xbf16>, vector<16x16xbf16>, vector<8x16xf32> -> vector<8x16xf32>
    %cst_37 = arith.constant -1.000000e+30 : f32
    %91 = vector.broadcast %cst_37 : f32 to vector<8x16xf32>
    %92 = arith.select %44, %90, %91 : vector<8x16xi1>, vector<8x16xf32>
    %cst_38 = arith.constant dense<0xFF800000> : vector<8xf32>
    %93 = vector.multi_reduction <maximumf>, %92, %cst_38 [1] : vector<8x16xf32> to vector<8xf32>
    %94 = vector.shape_cast %93 : vector<8xf32> to vector<8x1xf32>
    %95 = vector.broadcast %94 : vector<8x1xf32> to vector<8x16xf32>
    %96 = arith.subf %92, %95 : vector<8x16xf32>
    %97 = math.exp %96 : vector<8x16xf32>
    %cst_39 = arith.constant dense<0.000000e+00> : vector<8xf32>
    %98 = vector.multi_reduction <add>, %97, %cst_39 [1] : vector<8x16xf32> to vector<8xf32>
    %99 = vector.shape_cast %98 : vector<8xf32> to vector<8x1xf32>
    %100 = tpu.reciprocal %99 {approx = true} : vector<8x1xf32> -> vector<8x1xf32>
    %101 = vector.broadcast %100 : vector<8x1xf32> to vector<8x16xf32>
    %102 = arith.mulf %97, %101 : vector<8x16xf32>
    %103 = arith.truncf %102 : vector<8x16xf32> to vector<8x16xbf16>
    %cst_40 = arith.constant dense<0.000000e+00> : vector<8x16xf32>
    %104 = tpu.matmul %103, %89, %cst_40 {dimension_numbers = #tpu.dot_dimension_numbers<[1], [0], [0], [1], [0, 0, 1, 1], [], []>} : vector<8x16xbf16>, vector<16x16xbf16>, vector<8x16xf32> -> vector<8x16xf32>
    %105 = arith.truncf %104 : vector<8x16xf32> to vector<8x16xbf16>
    %c0_41 = arith.constant 0 : index
    %c32 = arith.constant 32 : index
    %106 = vector.load %arg20[%c0_41, %c32] : memref<8x64xbf16, #tpu.memory_space<vmem>>, vector<8x16xbf16>
    tpu.vector_store %arg20[%c0_41, %c32], %105 {strides = array<i32>} : memref<8x64xbf16, #tpu.memory_space<vmem>>, vector<8x16xbf16>,
    %107 = vector.extract_strided_slice %40 {offsets = [0, 48], sizes = [8, 16], strides = [1, 1]} : vector<8x64xbf16> to vector<8x16xbf16>
    %108 = vector.extract_strided_slice %45 {offsets = [0, 48], sizes = [16, 16], strides = [1, 1]} : vector<16x64xbf16> to vector<16x16xbf16>
    %109 = vector.extract_strided_slice %46 {offsets = [0, 48], sizes = [16, 16], strides = [1, 1]} : vector<16x64xbf16> to vector<16x16xbf16>
    %cst_42 = arith.constant dense<0.000000e+00> : vector<8x16xf32>
    %110 = tpu.matmul %107, %108, %cst_42 {dimension_numbers = #tpu.dot_dimension_numbers<[1], [1], [0], [0], [0, 0, 1, 0], [], []>} : vector<8x16xbf16>, vector<16x16xbf16>, vector<8x16xf32> -> vector<8x16xf32>
    %cst_43 = arith.constant -1.000000e+30 : f32
    %111 = vector.broadcast %cst_43 : f32 to vector<8x16xf32>
    %112 = arith.select %44, %110, %111 : vector<8x16xi1>, vector<8x16xf32>
    %cst_44 = arith.constant dense<0xFF800000> : vector<8xf32>
    %113 = vector.multi_reduction <maximumf>, %112, %cst_44 [1] : vector<8x16xf32> to vector<8xf32>
    %114 = vector.shape_cast %113 : vector<8xf32> to vector<8x1xf32>
    %115 = vector.broadcast %114 : vector<8x1xf32> to vector<8x16xf32>
    %116 = arith.subf %112, %115 : vector<8x16xf32>
    %117 = math.exp %116 : vector<8x16xf32>
    %cst_45 = arith.constant dense<0.000000e+00> : vector<8xf32>
    %118 = vector.multi_reduction <add>, %117, %cst_45 [1] : vector<8x16xf32> to vector<8xf32>
    %119 = vector.shape_cast %118 : vector<8xf32> to vector<8x1xf32>
    %120 = tpu.reciprocal %119 {approx = true} : vector<8x1xf32> -> vector<8x1xf32>
    %121 = vector.broadcast %120 : vector<8x1xf32> to vector<8x16xf32>
    %122 = arith.mulf %117, %121 : vector<8x16xf32>
    %123 = arith.truncf %122 : vector<8x16xf32> to vector<8x16xbf16>
    %cst_46 = arith.constant dense<0.000000e+00> : vector<8x16xf32>
    %124 = tpu.matmul %123, %109, %cst_46 {dimension_numbers = #tpu.dot_dimension_numbers<[1], [0], [0], [1], [0, 0, 1, 1], [], []>} : vector<8x16xbf16>, vector<16x16xbf16>, vector<8x16xf32> -> vector<8x16xf32>
    %125 = arith.truncf %124 : vector<8x16xf32> to vector<8x16xbf16>
    %c0_47 = arith.constant 0 : index
    %c48 = arith.constant 48 : index
    %126 = vector.load %arg20[%c0_47, %c48] : memref<8x64xbf16, #tpu.memory_space<vmem>>, vector<8x16xbf16>
    tpu.vector_store %arg20[%c0_47, %c48], %125 {strides = array<i32>} : memref<8x64xbf16, #tpu.memory_space<vmem>>, vector<8x16xbf16>,
    %c0_48 = arith.constant 0 : index
    %c0_49 = arith.constant 0 : index
    %127 = vector.load %arg20[%c0_48, %c0_49] : memref<8x64xbf16, #tpu.memory_space<vmem>>, vector<8x64xbf16>
    %c0_50 = arith.constant 0 : index
    %c0_51 = arith.constant 0 : index
    %128 = vector.load %arg15[%c0_50, %c0_51] : memref<64x128xbf16, #tpu.memory_space<vmem>>, vector<64x128xbf16>
    %cst_52 = arith.constant dense<0.000000e+00> : vector<8x128xf32>
    %129 = tpu.matmul %127, %128, %cst_52 {dimension_numbers = #tpu.dot_dimension_numbers<[1], [0], [0], [1], [0, 0, 1, 1], [], []>} : vector<8x64xbf16>, vector<64x128xbf16>, vector<8x128xf32> -> vector<8x128xf32>
    %c0_53 = arith.constant 0 : index
    %c0_54 = arith.constant 0 : index
    %130 = vector.load %arg16[%c0_53, %c0_54] : memref<1x128xf32, #tpu.memory_space<vmem>>, vector<1x128xf32>
    %131 = vector.broadcast %130 : vector<1x128xf32> to vector<8x128xf32>
    %132 = arith.addf %129, %131 : vector<8x128xf32>
    %c0_55 = arith.constant 0 : index
    %c0_56 = arith.constant 0 : index
    %c0_57 = arith.constant 0 : index
    %133 = vector.load %arg17[%c0_55, %c0_56, %c0_57] : memref<1x8x128xf32, #tpu.memory_space<vmem>>, vector<1x8x128xf32>
    %134 = vector.shape_cast %133 : vector<1x8x128xf32> to vector<8x128xf32>
    %135 = vector.shape_cast %132 : vector<8x128xf32> to vector<1x8x128xf32>
    tpu.vector_store %arg17[%c0_55, %c0_56, %c0_57], %135 {strides = array<i32>} : memref<1x8x128xf32, #tpu.memory_space<vmem>>, vector<1x8x128xf32>,
    return
  }
  func.func @transform_0(%arg0: i32, %arg1: i32) -> (i32, i32, i32) {
    %c0_i32 = arith.constant 0 : i32
    %c0_i32_0 = arith.constant 0 : i32
    return %arg0, %arg1, %c0_i32 : i32, i32, i32
  }
  func.func @transform_1(%arg0: i32, %arg1: i32) -> (i32, i32, i32) {
    %c0_i32 = arith.constant 0 : i32
    %c0_i32_0 = arith.constant 0 : i32
    %c0_i32_1 = arith.constant 0 : i32
    return %arg0, %c0_i32, %c0_i32_0 : i32, i32, i32
  }
  func.func @transform_2(%arg0: i32, %arg1: i32) -> (i32, i32, i32) {
    %c0_i32 = arith.constant 0 : i32
    %c0_i32_0 = arith.constant 0 : i32
    return %arg0, %arg1, %c0_i32 : i32, i32, i32
  }
  func.func @transform_3(%arg0: i32, %arg1: i32) -> (i32, i32) {
    %c0_i32 = arith.constant 0 : i32
    %c0_i32_0 = arith.constant 0 : i32
    %c0_i32_1 = arith.constant 0 : i32
    return %c0_i32, %c0_i32_0 : i32, i32
  }
  func.func @transform_4(%arg0: i32, %arg1: i32) -> (i32, i32) {
    %c0_i32 = arith.constant 0 : i32
    %c0_i32_0 = arith.constant 0 : i32
    %c0_i32_1 = arith.constant 0 : i32
    return %c0_i32, %c0_i32_0 : i32, i32
  }
  func.func @transform_5(%arg0: i32, %arg1: i32) -> (i32, i32) {
    %c0_i32 = arith.constant 0 : i32
    %c0_i32_0 = arith.constant 0 : i32
    %c0_i32_1 = arith.constant 0 : i32
    return %c0_i32, %c0_i32_0 : i32, i32
  }
  func.func @transform_6(%arg0: i32, %arg1: i32) -> (i32, i32) {
    %c0_i32 = arith.constant 0 : i32
    %c0_i32_0 = arith.constant 0 : i32
    %c0_i32_1 = arith.constant 0 : i32
    return %c0_i32, %c0_i32_0 : i32, i32
  }
  func.func @transform_7(%arg0: i32, %arg1: i32) -> (i32, i32) {
    %c0_i32 = arith.constant 0 : i32
    %c0_i32_0 = arith.constant 0 : i32
    %c0_i32_1 = arith.constant 0 : i32
    return %c0_i32, %c0_i32_0 : i32, i32
  }
  func.func @transform_8(%arg0: i32, %arg1: i32) -> (i32, i32) {
    %c0_i32 = arith.constant 0 : i32
    %c0_i32_0 = arith.constant 0 : i32
    %c0_i32_1 = arith.constant 0 : i32
    return %c0_i32, %c0_i32_0 : i32, i32
  }
  func.func @transform_9(%arg0: i32, %arg1: i32) -> (i32, i32) {
    %c0_i32 = arith.constant 0 : i32
    %c0_i32_0 = arith.constant 0 : i32
    %c0_i32_1 = arith.constant 0 : i32
    return %c0_i32, %c0_i32_0 : i32, i32
  }
  func.func @transform_10(%arg0: i32, %arg1: i32) -> (i32, i32) {
    %c0_i32 = arith.constant 0 : i32
    %c0_i32_0 = arith.constant 0 : i32
    %c0_i32_1 = arith.constant 0 : i32
    return %c0_i32, %c0_i32_0 : i32, i32
  }
  func.func @transform_11(%arg0: i32, %arg1: i32) -> (i32, i32) {
    %c0_i32 = arith.constant 0 : i32
    %c0_i32_0 = arith.constant 0 : i32
    %c0_i32_1 = arith.constant 0 : i32
    return %c0_i32, %c0_i32_0 : i32, i32
  }
  func.func @transform_12(%arg0: i32, %arg1: i32) -> (i32, i32) {
    %c0_i32 = arith.constant 0 : i32
    %c0_i32_0 = arith.constant 0 : i32
    %c0_i32_1 = arith.constant 0 : i32
    return %c0_i32, %c0_i32_0 : i32, i32
  }
  func.func @transform_13(%arg0: i32, %arg1: i32) -> (i32, i32) {
    %c0_i32 = arith.constant 0 : i32
    %c0_i32_0 = arith.constant 0 : i32
    %c0_i32_1 = arith.constant 0 : i32
    return %c0_i32, %c0_i32_0 : i32, i32
  }
  func.func @transform_14(%arg0: i32, %arg1: i32) -> (i32, i32) {
    %c0_i32 = arith.constant 0 : i32
    %c0_i32_0 = arith.constant 0 : i32
    %c0_i32_1 = arith.constant 0 : i32
    return %c0_i32, %c0_i32_0 : i32, i32
  }
  func.func @transform_15(%arg0: i32, %arg1: i32) -> (i32, i32, i32) {
    %c0_i32 = arith.constant 0 : i32
    %c0_i32_0 = arith.constant 0 : i32
    return %arg0, %arg1, %c0_i32 : i32, i32, i32
  }
}

</mosaic_0001>

<llo_original>
// kernel: tpu_custom_call.1
$region0: #{tpu_custom_call.1}
  #allocation0 [shape = 'u32[]', space=smem, size = 0x4, offset = 0x4, fixed_abs, tag = 'smem constant byte address 0x4 - core index']
  #allocation1 [shape = 'u32[144,128]{1,0:T(1,128)}', space=vmem, size = 0x12000, scoped, tag = 'internal scratch']
  #allocation2 [shape = 'bf16[16,64]{1,0:T(16,128)(2,1)}', space=vmem, size = 0x1000, scoped, tag = 'scratch operand']
  #allocation3 [shape = 'bf16[16,64]{1,0:T(16,128)(2,1)}', space=vmem, size = 0x1000, scoped, tag = 'scratch operand']
  #allocation4 [shape = 'bf16[8,64]{1,0:T(8,128)(2,1)}', space=vmem, size = 0x800, scoped, tag = 'scratch operand']
  %s0 = inlined_call_operand.hbm [shape: bf16[2,8,32], index: 0, kind: input, shape index: {}]
  %s1 = inlined_call_operand.hbm [shape: bf16[2,16,24], index: 1, kind: input, shape index: {}]
  %s2 = inlined_call_operand.hbm [shape: s8[2,8,16], index: 2, kind: input, shape index: {}]
  %s3 = inlined_call_operand.vmem [shape: f32[1,32], index: 3, kind: input, shape index: {}]
  %s4 = inlined_call_operand.hbm [shape: f32[1,32], index: 4, kind: input, shape index: {}]
  %s5 = inlined_call_operand.hbm [shape: f32[1,24], index: 5, kind: input, shape index: {}]
  %s6 = inlined_call_operand.hbm [shape: f32[1,24], index: 6, kind: input, shape index: {}]
  %s7 = inlined_call_operand.vmem [shape: bf16[32,64], index: 7, kind: input, shape index: {}]
  %s8 = inlined_call_operand.hbm [shape: f32[1,64], index: 8, kind: input, shape index: {}]
  %s9 = inlined_call_operand.hbm [shape: bf16[24,64], index: 9, kind: input, shape index: {}]
  %s10 = inlined_call_operand.hbm [shape: f32[1,64], index: 10, kind: input, shape index: {}]
  %s11 = inlined_call_operand.hbm [shape: bf16[24,64], index: 11, kind: input, shape index: {}]
  %s12 = inlined_call_operand.hbm [shape: f32[1,64], index: 12, kind: input, shape index: {}]
  %s13 = inlined_call_operand.vmem [shape: bf16[64,128], index: 13, kind: input, shape index: {}]
  %s14 = inlined_call_operand.vmem [shape: f32[1,128], index: 14, kind: input, shape index: {}]
  %s15 = inlined_call_operand.hbm [shape: f32[2,8,128], index: 15, kind: output, shape index: {}]
  %s16 = sld [smem:[#allocation0]]
  $region141: #{tpu_custom_call.1} parent=0
    _
  %s18 = ssub.s32 1, %s16
  %s19 = scalar_select 0, %s18, %s16
  $region1: #{tpu_custom_call.1} parent=0
    #allocation5 [shape = 'u8[4096]{0}', space=vmem, size = 0x1000, scoped, tag = 'input window, operand 0']
    #allocation6 [shape = 's32[2]{0}', space=sflag, size = 0x8, scoped, tag = 'scoped memory for tpu_custom_call.1']
    #allocation7 [shape = 's32[2]{0}', space=sflag, size = 0x8, scoped, tag = 'scoped memory for tpu_custom_call.1']
    #allocation8 [shape = 'u8[8192]{0}', space=vmem, size = 0x2000, scoped, tag = 'input window, operand 1']
    #allocation9 [shape = 's32[2]{0}', space=sflag, size = 0x8, scoped, tag = 'scoped memory for tpu_custom_call.1']
    #allocation10 [shape = 'u8[2048]{0}', space=vmem, size = 0x800, scoped, tag = 'input window, operand 2']
    #allocation11 [shape = 'u8[512]{0}', space=vmem, size = 0x400, scoped, tag = 'input window, operand 4, single buffered']
    #allocation12 [shape = 's32[1]{0}', space=sflag, size = 0x4, scoped, tag = 'scoped memory for tpu_custom_call.1']
    #allocation13 [shape = 'u8[512]{0}', space=vmem, size = 0x400, scoped, tag = 'input window, operand 5, single buffered']
    #allocation14 [shape = 'u8[512]{0}', space=vmem, size = 0x400, scoped, tag = 'input window, operand 6, single buffered']
    #allocation15 [shape = 's32[1]{0}', space=sflag, size = 0x4, scoped, tag = 'scoped memory for tpu_custom_call.1']
    #allocation16 [shape = 'u8[512]{0}', space=vmem, size = 0x400, scoped, tag = 'input window, operand 8, single buffered']
    #allocation17 [shape = 'u8[6144]{0}', space=vmem, size = 0x1800, scoped, tag = 'input window, operand 9, single buffered']
    #allocation18 [shape = 's32[1]{0}', space=sflag, size = 0x4, scoped, tag = 'scoped memory for tpu_custom_call.1']
    #allocation19 [shape = 'u8[512]{0}', space=vmem, size = 0x400, scoped, tag = 'input window, operand 10, single buffered']
    #allocation20 [shape = 'u8[6144]{0}', space=vmem, size = 0x1800, scoped, tag = 'input window, operand 11, single buffered']
    #allocation21 [shape = 's32[1]{0}', space=sflag, size = 0x4, scoped, tag = 'scoped memory for tpu_custom_call.1']
    #allocation22 [shape = 'u8[512]{0}', space=vmem, size = 0x400, scoped, tag = 'input window, operand 12, single buffered']
    #allocation23 [shape = 'u8[8192]{0}', space=vmem, size = 0x2000, scoped, tag = 'output window, operand 0']
    %20 = vsyncpa [#allocation6], 0
    %s21 = scalar_lea.sflag [#allocation6], 1
    %22 = vsyncpa %s21, 0
    %23 = vsyncpa [#allocation9], 0
    %s24 = scalar_lea.sflag [#allocation9], 1
    %25 = vsyncpa %s24, 0
    %26 = vsyncpa [#allocation12], 0
    %27 = vsyncpa [#allocation15], 0
    %28 = vsyncpa [#allocation18], 0
    %29 = vsyncpa [#allocation21], 0
    %30 = vsyncpa [#allocation7], 0
    %s31 = scalar_lea.sflag [#allocation7], 1
    %32 = vsyncpa %s31, 0
    loop: start=0, step=1, limit=4
    $region2: #{tpu_custom_call.1} parent=1 // loop_pre_header
      _
    $region3: #{tpu_custom_call.1} parent=1 // loop_header
      %s34 = sphi 0, %s38
      %p35 = scmp.ge.s32.totalorder %s34, 4
      %s41 = sphi 0, %s53
      %s42 = sphi 0, %s49
      %s43 = sphi 0, %s41
      %s44 = sphi 0, %s42
      %s45 = sphi 0, %s43
      %s46 = sphi 0, %s44
      %s58 = sphi 0, %s60
      %s61 = sphi 0, %s58
      %s62 = sphi 0, %s61
      %s78 = sphi 0, %s62
      %s84 = sphi 0, %s86
      %s87 = sphi 0, %s84
      %s88 = sphi 0, %s87
      %s104 = sphi 0, %s88
      %s112 = sphi 0, %s114
      %s115 = sphi 0, %s112
      %s116 = sphi 0, %s115
      %s132 = sphi 0, %s116
      %s136 = sphi 0, %s136
      %s138 = sphi 0, %s136
      %s139 = sphi 0, %s138
      %s153 = sphi 0, %s139
      %s157 = sphi 0, %s157
      %s159 = sphi 0, %s157
      %s160 = sphi 0, %s159
      %s174 = sphi 0, %s160
      %s178 = sphi 0, %s178
      %s180 = sphi 0, %s178
      %s181 = sphi 0, %s180
      %s195 = sphi 0, %s181
      %s199 = sphi 0, %s199
      %s201 = sphi 0, %s199
      %s202 = sphi 0, %s201
      %s216 = sphi 0, %s202
      %s220 = sphi 0, %s220
      %s222 = sphi 0, %s220
      %s223 = sphi 0, %s222
      %s237 = sphi 0, %s223
      %s241 = sphi 0, %s241
      %s243 = sphi 0, %s241
      %s244 = sphi 0, %s243
      %s258 = sphi 0, %s244
      %s262 = sphi 0, %s262
      %s264 = sphi 0, %s262
      %s265 = sphi 0, %s264
      %s279 = sphi 0, %s265
      %s283 = sphi 0, %s283
      %s285 = sphi 0, %s283
      %s286 = sphi 0, %s285
      %s300 = sphi 0, %s286
      %s304 = sphi 0, %s304
      %s306 = sphi 0, %s304
      %s307 = sphi 0, %s306
      %s321 = sphi 0, %s307
      %s325 = sphi 0, %s325
      %s327 = sphi 0, %s325
      %s328 = sphi 0, %s327
      %s342 = sphi 0, %s328
      %s346 = sphi 0, %s346
      %s348 = sphi 0, %s346
      %s349 = sphi 0, %s348
      %s363 = sphi 0, %s349
      %s367 = sphi 0, %s367
      %s369 = sphi 0, %s367
      %s370 = sphi 0, %s369
      %s384 = sphi 0, %s370
      %s392 = sphi 0, %s394
      %s395 = sphi 0, %s392
      %s396 = sphi 0, %s395
      %s412 = sphi 0, %s396
    $region4: #{tpu_custom_call.1} parent=1 // loop_header_branch
      %37 = sbr.rel (%p35) target = $region8
    $region5: #{tpu_custom_call.1} parent=1 // loop_body
      %s39 = ssub.s32 %s34, 1
      %s40 = ssub.s32 %s34, 2
      %s47 = sadd.s32 1, %s42
      %p48 = scmp.ge.s32.totalorder %s47, 1
      %s49 = scalar_select %p48, 0, %s47
      %s50 = sadd.s32 1, %s41
      %s51 = scalar_select %p48, %s50, %s41
      %p52 = scmp.ge.s32.totalorder %s51, 2
      %s53 = scalar_select %p52, 0, %s51
      %s54 = ssub.s32 %s41, %s53
      %s55 = ssub.s32 %s42, %s49
      %s56 = sor.u32 %s54, %s55
      %p57 = scmp.eq.s32.totalorder %s56, 0
      %s59 = sadd.s32 %s58, 1
      %s60 = scalar_select %p57, %s58, %s59
      %p63 = pneg %p57
      %p64 = scmp.eq.s32.totalorder %s34, 1
      %p65 = por %p63, %p64
      %p66 = scmp.ne.s32.totalorder %s58, %s61
      %p67 = scmp.eq.s32.totalorder %s34, 0
      %p68 = por %p66, %p67
      %p69 = scmp.ne.s32.totalorder %s58, %s61
      %p70 = scmp.eq.s32.totalorder %s39, 1
      %p71 = por %p69, %p70
      %p72 = scmp.ne.s32.totalorder %s61, %s62
      %p73 = scmp.eq.s32.totalorder %s39, 0
      %p74 = por %p72, %p73
      %p75 = scmp.ne.s32.totalorder %s61, %s62
      %p76 = scmp.eq.s32.totalorder %s40, 1
      %p77 = por %p75, %p76
      %p79 = scmp.ne.s32.totalorder %s62, %s78
      %p80 = scmp.eq.s32.totalorder %s40, 0
      %p81 = por %p79, %p80
      %s82 = ssub.s32 %s41, %s53
      %p83 = scmp.eq.s32.totalorder %s82, 0
      %s85 = sadd.s32 %s84, 1
      %s86 = scalar_select %p83, %s84, %s85
      %p89 = pneg %p83
      %p90 = scmp.eq.s32.totalorder %s34, 1
      %p91 = por %p89, %p90
      %p92 = scmp.ne.s32.totalorder %s84, %s87
      %p93 = scmp.eq.s32.totalorder %s34, 0
      %p94 = por %p92, %p93
      %p95 = scmp.ne.s32.totalorder %s84, %s87
      %p96 = scmp.eq.s32.totalorder %s39, 1
      %p97 = por %p95, %p96
      %p98 = scmp.ne.s32.totalorder %s87, %s88
      %p99 = scmp.eq.s32.totalorder %s39, 0
      %p100 = por %p98, %p99
      %p101 = scmp.ne.s32.totalorder %s87, %s88
      %p102 = scmp.eq.s32.totalorder %s40, 1
      %p103 = por %p101, %p102
      %p105 = scmp.ne.s32.totalorder %s88, %s104
      %p106 = scmp.eq.s32.totalorder %s40, 0
      %p107 = por %p105, %p106
      %s108 = ssub.s32 %s41, %s53
      %s109 = ssub.s32 %s42, %s49
      %s110 = sor.u32 %s108, %s109
      %p111 = scmp.eq.s32.totalorder %s110, 0
      %s113 = sadd.s32 %s112, 1
      %s114 = scalar_select %p111, %s112, %s113
      %p117 = pneg %p111
      %p118 = scmp.eq.s32.totalorder %s34, 1
      %p119 = por %p117, %p118
      %p120 = scmp.ne.s32.totalorder %s112, %s115
      %p121 = scmp.eq.s32.totalorder %s34, 0
      %p122 = por %p120, %p121
      %p123 = scmp.ne.s32.totalorder %s112, %s115
      %p124 = scmp.eq.s32.totalorder %s39, 1
      %p125 = por %p123, %p124
      %p126 = scmp.ne.s32.totalorder %s115, %s116
      %p127 = scmp.eq.s32.totalorder %s39, 0
      %p128 = por %p126, %p127
      %p129 = scmp.ne.s32.totalorder %s115, %s116
      %p130 = scmp.eq.s32.totalorder %s40, 1
      %p131 = por %p129, %p130
      %p133 = scmp.ne.s32.totalorder %s116, %s132
      %p134 = scmp.eq.s32.totalorder %s40, 0
      %p135 = por %p133, %p134
      %s137 = sadd.s32 %s136, 1
      %p140 = scmp.eq.s32.totalorder %s34, 1
      %p141 = scmp.ne.s32.totalorder %s136, %s138
      %p142 = scmp.eq.s32.totalorder %s34, 0
      %p143 = por %p141, %p142
      %p144 = scmp.ne.s32.totalorder %s136, %s138
      %p145 = scmp.eq.s32.totalorder %s39, 1
      %p146 = por %p144, %p145
      %p147 = scmp.ne.s32.totalorder %s138, %s139
      %p148 = scmp.eq.s32.totalorder %s39, 0
      %p149 = por %p147, %p148
      %p150 = scmp.ne.s32.totalorder %s138, %s139
      %p151 = scmp.eq.s32.totalorder %s40, 1
      %p152 = por %p150, %p151
      %p154 = scmp.ne.s32.totalorder %s139, %s153
      %p155 = scmp.eq.s32.totalorder %s40, 0
      %p156 = por %p154, %p155
      %s158 = sadd.s32 %s157, 1
      %p161 = scmp.eq.s32.totalorder %s34, 1
      %p162 = scmp.ne.s32.totalorder %s157, %s159
      %p163 = scmp.eq.s32.totalorder %s34, 0
      %p164 = por %p162, %p163
      %p165 = scmp.ne.s32.totalorder %s157, %s159
      %p166 = scmp.eq.s32.totalorder %s39, 1
      %p167 = por %p165, %p166
      %p168 = scmp.ne.s32.totalorder %s159, %s160
      %p169 = scmp.eq.s32.totalorder %s39, 0
      %p170 = por %p168, %p169
      %p171 = scmp.ne.s32.totalorder %s159, %s160
      %p172 = scmp.eq.s32.totalorder %s40, 1
      %p173 = por %p171, %p172
      %p175 = scmp.ne.s32.totalorder %s160, %s174
      %p176 = scmp.eq.s32.totalorder %s40, 0
      %p177 = por %p175, %p176
      %s179 = sadd.s32 %s178, 1
      %p182 = scmp.eq.s32.totalorder %s34, 1
      %p183 = scmp.ne.s32.totalorder %s178, %s180
      %p184 = scmp.eq.s32.totalorder %s34, 0
      %p185 = por %p183, %p184
      %p186 = scmp.ne.s32.totalorder %s178, %s180
      %p187 = scmp.eq.s32.totalorder %s39, 1
      %p188 = por %p186, %p187
      %p189 = scmp.ne.s32.totalorder %s180, %s181
      %p190 = scmp.eq.s32.totalorder %s39, 0
      %p191 = por %p189, %p190
      %p192 = scmp.ne.s32.totalorder %s180, %s181
      %p193 = scmp.eq.s32.totalorder %s40, 1
      %p194 = por %p192, %p193
      %p196 = scmp.ne.s32.totalorder %s181, %s195
      %p197 = scmp.eq.s32.totalorder %s40, 0
      %p198 = por %p196, %p197
      %s200 = sadd.s32 %s199, 1
      %p203 = scmp.eq.s32.totalorder %s34, 1
      %p204 = scmp.ne.s32.totalorder %s199, %s201
      %p205 = scmp.eq.s32.totalorder %s34, 0
      %p206 = por %p204, %p205
      %p207 = scmp.ne.s32.totalorder %s199, %s201
      %p208 = scmp.eq.s32.totalorder %s39, 1
      %p209 = por %p207, %p208
      %p210 = scmp.ne.s32.totalorder %s201, %s202
      %p211 = scmp.eq.s32.totalorder %s39, 0
      %p212 = por %p210, %p211
      %p213 = scmp.ne.s32.totalorder %s201, %s202
      %p214 = scmp.eq.s32.totalorder %s40, 1
      %p215 = por %p213, %p214
      %p217 = scmp.ne.s32.totalorder %s202, %s216
      %p218 = scmp.eq.s32.totalorder %s40, 0
      %p219 = por %p217, %p218
      %s221 = sadd.s32 %s220, 1
      %p224 = scmp.eq.s32.totalorder %s34, 1
      %p225 = scmp.ne.s32.totalorder %s220, %s222
      %p226 = scmp.eq.s32.totalorder %s34, 0
      %p227 = por %p225, %p226
      %p228 = scmp.ne.s32.totalorder %s220, %s222
      %p229 = scmp.eq.s32.totalorder %s39, 1
      %p230 = por %p228, %p229
      %p231 = scmp.ne.s32.totalorder %s222, %s223
      %p232 = scmp.eq.s32.totalorder %s39, 0
      %p233 = por %p231, %p232
      %p234 = scmp.ne.s32.totalorder %s222, %s223
      %p235 = scmp.eq.s32.totalorder %s40, 1
      %p236 = por %p234, %p235
      %p238 = scmp.ne.s32.totalorder %s223, %s237
      %p239 = scmp.eq.s32.totalorder %s40, 0
      %p240 = por %p238, %p239
      %s242 = sadd.s32 %s241, 1
      %p245 = scmp.eq.s32.totalorder %s34, 1
      %p246 = scmp.ne.s32.totalorder %s241, %s243
      %p247 = scmp.eq.s32.totalorder %s34, 0
      %p248 = por %p246, %p247
      %p249 = scmp.ne.s32.totalorder %s241, %s243
      %p250 = scmp.eq.s32.totalorder %s39, 1
      %p251 = por %p249, %p250
      %p252 = scmp.ne.s32.totalorder %s243, %s244
      %p253 = scmp.eq.s32.totalorder %s39, 0
      %p254 = por %p252, %p253
      %p255 = scmp.ne.s32.totalorder %s243, %s244
      %p256 = scmp.eq.s32.totalorder %s40, 1
      %p257 = por %p255, %p256
      %p259 = scmp.ne.s32.totalorder %s244, %s258
      %p260 = scmp.eq.s32.totalorder %s40, 0
      %p261 = por %p259, %p260
      %s263 = sadd.s32 %s262, 1
      %p266 = scmp.eq.s32.totalorder %s34, 1
      %p267 = scmp.ne.s32.totalorder %s262, %s264
      %p268 = scmp.eq.s32.totalorder %s34, 0
      %p269 = por %p267, %p268
      %p270 = scmp.ne.s32.totalorder %s262, %s264
      %p271 = scmp.eq.s32.totalorder %s39, 1
      %p272 = por %p270, %p271
      %p273 = scmp.ne.s32.totalorder %s264, %s265
      %p274 = scmp.eq.s32.totalorder %s39, 0
      %p275 = por %p273, %p274
      %p276 = scmp.ne.s32.totalorder %s264, %s265
      %p277 = scmp.eq.s32.totalorder %s40, 1
      %p278 = por %p276, %p277
      %p280 = scmp.ne.s32.totalorder %s265, %s279
      %p281 = scmp.eq.s32.totalorder %s40, 0
      %p282 = por %p280, %p281
      %s284 = sadd.s32 %s283, 1
      %p287 = scmp.eq.s32.totalorder %s34, 1
      %p288 = scmp.ne.s32.totalorder %s283, %s285
      %p289 = scmp.eq.s32.totalorder %s34, 0
      %p290 = por %p288, %p289
      %p291 = scmp.ne.s32.totalorder %s283, %s285
      %p292 = scmp.eq.s32.totalorder %s39, 1
      %p293 = por %p291, %p292
      %p294 = scmp.ne.s32.totalorder %s285, %s286
      %p295 = scmp.eq.s32.totalorder %s39, 0
      %p296 = por %p294, %p295
      %p297 = scmp.ne.s32.totalorder %s285, %s286
      %p298 = scmp.eq.s32.totalorder %s40, 1
      %p299 = por %p297, %p298
      %p301 = scmp.ne.s32.totalorder %s286, %s300
      %p302 = scmp.eq.s32.totalorder %s40, 0
      %p303 = por %p301, %p302
      %s305 = sadd.s32 %s304, 1
      %p308 = scmp.eq.s32.totalorder %s34, 1
      %p309 = scmp.ne.s32.totalorder %s304, %s306
      %p310 = scmp.eq.s32.totalorder %s34, 0
      %p311 = por %p309, %p310
      %p312 = scmp.ne.s32.totalorder %s304, %s306
      %p313 = scmp.eq.s32.totalorder %s39, 1
      %p314 = por %p312, %p313
      %p315 = scmp.ne.s32.totalorder %s306, %s307
      %p316 = scmp.eq.s32.totalorder %s39, 0
      %p317 = por %p315, %p316
      %p318 = scmp.ne.s32.totalorder %s306, %s307
      %p319 = scmp.eq.s32.totalorder %s40, 1
      %p320 = por %p318, %p319
      %p322 = scmp.ne.s32.totalorder %s307, %s321
      %p323 = scmp.eq.s32.totalorder %s40, 0
      %p324 = por %p322, %p323
      %s326 = sadd.s32 %s325, 1
      %p329 = scmp.eq.s32.totalorder %s34, 1
      %p330 = scmp.ne.s32.totalorder %s325, %s327
      %p331 = scmp.eq.s32.totalorder %s34, 0
      %p332 = por %p330, %p331
      %p333 = scmp.ne.s32.totalorder %s325, %s327
      %p334 = scmp.eq.s32.totalorder %s39, 1
      %p335 = por %p333, %p334
      %p336 = scmp.ne.s32.totalorder %s327, %s328
      %p337 = scmp.eq.s32.totalorder %s39, 0
      %p338 = por %p336, %p337
      %p339 = scmp.ne.s32.totalorder %s327, %s328
      %p340 = scmp.eq.s32.totalorder %s40, 1
      %p341 = por %p339, %p340
      %p343 = scmp.ne.s32.totalorder %s328, %s342
      %p344 = scmp.eq.s32.totalorder %s40, 0
      %p345 = por %p343, %p344
      %s347 = sadd.s32 %s346, 1
      %p350 = scmp.eq.s32.totalorder %s34, 1
      %p351 = scmp.ne.s32.totalorder %s346, %s348
      %p352 = scmp.eq.s32.totalorder %s34, 0
      %p353 = por %p351, %p352
      %p354 = scmp.ne.s32.totalorder %s346, %s348
      %p355 = scmp.eq.s32.totalorder %s39, 1
      %p356 = por %p354, %p355
      %p357 = scmp.ne.s32.totalorder %s348, %s349
      %p358 = scmp.eq.s32.totalorder %s39, 0
      %p359 = por %p357, %p358
      %p360 = scmp.ne.s32.totalorder %s348, %s349
      %p361 = scmp.eq.s32.totalorder %s40, 1
      %p362 = por %p360, %p361
      %p364 = scmp.ne.s32.totalorder %s349, %s363
      %p365 = scmp.eq.s32.totalorder %s40, 0
      %p366 = por %p364, %p365
      %s368 = sadd.s32 %s367, 1
      %p371 = scmp.eq.s32.totalorder %s34, 1
      %p372 = scmp.ne.s32.totalorder %s367, %s369
      %p373 = scmp.eq.s32.totalorder %s34, 0
      %p374 = por %p372, %p373
      %p375 = scmp.ne.s32.totalorder %s367, %s369
      %p376 = scmp.eq.s32.totalorder %s39, 1
      %p377 = por %p375, %p376
      %p378 = scmp.ne.s32.totalorder %s369, %s370
      %p379 = scmp.eq.s32.totalorder %s39, 0
      %p380 = por %p378, %p379
      %p381 = scmp.ne.s32.totalorder %s369, %s370
      %p382 = scmp.eq.s32.totalorder %s40, 1
      %p383 = por %p381, %p382
      %p385 = scmp.ne.s32.totalorder %s370, %s384
      %p386 = scmp.eq.s32.totalorder %s40, 0
      %p387 = por %p385, %p386
      %s388 = ssub.s32 %s41, %s53
      %s389 = ssub.s32 %s42, %s49
      %s390 = sor.u32 %s388, %s389
      %p391 = scmp.eq.s32.totalorder %s390, 0
      %s393 = sadd.s32 %s392, 1
      %s394 = scalar_select %p391, %s392, %s393
      %p397 = pneg %p391
      %p398 = scmp.eq.s32.totalorder %s34, 1
      %p399 = por %p397, %p398
      %p400 = scmp.ne.s32.totalorder %s392, %s395
      %p401 = scmp.eq.s32.totalorder %s34, 0
      %p402 = por %p400, %p401
      %p403 = scmp.ne.s32.totalorder %s392, %s395
      %p404 = scmp.eq.s32.totalorder %s39, 1
      %p405 = por %p403, %p404
      %p406 = scmp.ne.s32.totalorder %s395, %s396
      %p407 = scmp.eq.s32.totalorder %s39, 0
      %p408 = por %p406, %p407
      %p409 = scmp.ne.s32.totalorder %s395, %s396
      %p410 = scmp.eq.s32.totalorder %s40, 1
      %p411 = por %p409, %p410
      %p413 = scmp.ne.s32.totalorder %s396, %s412
      %p414 = scmp.eq.s32.totalorder %s40, 0
      %p415 = por %p413, %p414
      %p416 = scmp.le.s32.totalorder 1, %s34
      %p417 = scmp.lt.s32.totalorder %s34, 3
      %p418 = pnand %p416, %p417
      %p419 = pneg %p418
      // Predicated region
      $region9: #{tpu_custom_call.1} parent=5 // pred_check
        _
      $region10: #{tpu_custom_call.1} parent=5 // pred_check_branch
        %421 = sbr.rel (%p418) target = $region12
      $region11: #{tpu_custom_call.1} parent=5 // pred_region
        %s422 = ssub.s32 %s34, 1
        // Predicated region
        $region13: #{tpu_custom_call.1} parent=11 // pred_check
          %p423 = pneg %p149
        $region14: #{tpu_custom_call.1} parent=11 // pred_check_branch
          %425 = sbr.rel (%p423) target = $region16
        $region15: #{tpu_custom_call.1} parent=11 // pred_region
          _
        $region16: #{tpu_custom_call.1} parent=11 // pred_fallthru
          _
        // Predicated region
        $region17: #{tpu_custom_call.1} parent=11 // pred_check
          %p426 = pneg %p170
        $region18: #{tpu_custom_call.1} parent=11 // pred_check_branch
          %428 = sbr.rel (%p426) target = $region20
        $region19: #{tpu_custom_call.1} parent=11 // pred_region
          %s430 = ssub.s32 16, 16
          %431 = vsyncadd [#allocation12], %s430
          %s433 = sshll.u32 [#allocation11], 4
          %s434 = int_to_ptr.vmem [resolvable:$true] %s433
          %436 = dma.hbm_to_vmem [thread:$0]  %s4, 16, %s434, [#allocation12]
        $region20: #{tpu_custom_call.1} parent=11 // pred_fallthru
          _
        // Predicated region
        $region21: #{tpu_custom_call.1} parent=11 // pred_check
          %p437 = pneg %p191
        $region22: #{tpu_custom_call.1} parent=11 // pred_check_branch
          %439 = sbr.rel (%p437) target = $region24
        $region23: #{tpu_custom_call.1} parent=11 // pred_region
          %s441 = ssub.s32 16, 16
          %442 = vsyncadd [#allocation12], %s441
          %s444 = sshll.u32 [#allocation13], 4
          %s445 = int_to_ptr.vmem [resolvable:$true] %s444
          %447 = dma.hbm_to_vmem [thread:$0]  %s5, 16, %s445, [#allocation12]
        $region24: #{tpu_custom_call.1} parent=11 // pred_fallthru
          _
        // Predicated region
        $region25: #{tpu_custom_call.1} parent=11 // pred_check
          %p448 = pneg %p212
        $region26: #{tpu_custom_call.1} parent=11 // pred_check_branch
          %450 = sbr.rel (%p448) target = $region28
        $region27: #{tpu_custom_call.1} parent=11 // pred_region
          %s452 = ssub.s32 16, 16
          %453 = vsyncadd [#allocation15], %s452
          %s455 = sshll.u32 [#allocation14], 4
          %s456 = int_to_ptr.vmem [resolvable:$true] %s455
          %458 = dma.hbm_to_vmem [thread:$0]  %s6, 16, %s456, [#allocation15]
        $region28: #{tpu_custom_call.1} parent=11 // pred_fallthru
          _
        // Predicated region
        $region29: #{tpu_custom_call.1} parent=11 // pred_check
          %p459 = pneg %p233
        $region30: #{tpu_custom_call.1} parent=11 // pred_check_branch
          %461 = sbr.rel (%p459) target = $region32
        $region31: #{tpu_custom_call.1} parent=11 // pred_region
          _
        $region32: #{tpu_custom_call.1} parent=11 // pred_fallthru
          _
        // Predicated region
        $region33: #{tpu_custom_call.1} parent=11 // pred_check
          %p462 = pneg %p254
        $region34: #{tpu_custom_call.1} parent=11 // pred_check_branch
          %464 = sbr.rel (%p462) target = $region36
        $region35: #{tpu_custom_call.1} parent=11 // pred_region
          %s466 = ssub.s32 16, 16
          %467 = vsyncadd [#allocation15], %s466
          %s469 = sshll.u32 [#allocation16], 4
          %s470 = int_to_ptr.vmem [resolvable:$true] %s469
          %472 = dma.hbm_to_vmem [thread:$0]  %s8, 16, %s470, [#allocation15]
        $region36: #{tpu_custom_call.1} parent=11 // pred_fallthru
          _
        // Predicated region
        $region37: #{tpu_custom_call.1} parent=11 // pred_check
          %p473 = pneg %p275
        $region38: #{tpu_custom_call.1} parent=11 // pred_check_branch
          %475 = sbr.rel (%p473) target = $region40
        $region39: #{tpu_custom_call.1} parent=11 // pred_region
          %s477 = ssub.s32 192, 192
          %478 = vsyncadd [#allocation18], %s477
          %s479 = sshll.u32 [#allocation17], 4
          %s480 = int_to_ptr.vmem [resolvable:$true] %s479
          %485 = dma.hbm_to_vmem [thread:$0]  %s9, 192, %s480, [#allocation18], 64, 64, 4
        $region40: #{tpu_custom_call.1} parent=11 // pred_fallthru
          _
        // Predicated region
        $region41: #{tpu_custom_call.1} parent=11 // pred_check
          %p486 = pneg %p296
        $region42: #{tpu_custom_call.1} parent=11 // pred_check_branch
          %488 = sbr.rel (%p486) target = $region44
        $region43: #{tpu_custom_call.1} parent=11 // pred_region
          %s490 = ssub.s32 16, 16
          %491 = vsyncadd [#allocation18], %s490
          %s493 = sshll.u32 [#allocation19], 4
          %s494 = int_to_ptr.vmem [resolvable:$true] %s493
          %496 = dma.hbm_to_vmem [thread:$0]  %s10, 16, %s494, [#allocation18]
        $region44: #{tpu_custom_call.1} parent=11 // pred_fallthru
          _
        // Predicated region
        $region45: #{tpu_custom_call.1} parent=11 // pred_check
          %p497 = pneg %p317
        $region46: #{tpu_custom_call.1} parent=11 // pred_check_branch
          %499 = sbr.rel (%p497) target = $region48
        $region47: #{tpu_custom_call.1} parent=11 // pred_region
          %s501 = ssub.s32 192, 192
          %502 = vsyncadd [#allocation21], %s501
          %s503 = sshll.u32 [#allocation20], 4
          %s504 = int_to_ptr.vmem [resolvable:$true] %s503
          %509 = dma.hbm_to_vmem [thread:$0]  %s11, 192, %s504, [#allocation21], 64, 64, 4
        $region48: #{tpu_custom_call.1} parent=11 // pred_fallthru
          _
        // Predicated region
        $region49: #{tpu_custom_call.1} parent=11 // pred_check
          %p510 = pneg %p338
        $region50: #{tpu_custom_call.1} parent=11 // pred_check_branch
          %512 = sbr.rel (%p510) target = $region52
        $region51: #{tpu_custom_call.1} parent=11 // pred_region
          %s514 = ssub.s32 16, 16
          %515 = vsyncadd [#allocation21], %s514
          %s517 = sshll.u32 [#allocation22], 4
          %s518 = int_to_ptr.vmem [resolvable:$true] %s517
          %520 = dma.hbm_to_vmem [thread:$0]  %s12, 16, %s518, [#allocation21]
        $region52: #{tpu_custom_call.1} parent=11 // pred_fallthru
          _
        // Predicated region
        $region53: #{tpu_custom_call.1} parent=11 // pred_check
          %p521 = pneg %p359
        $region54: #{tpu_custom_call.1} parent=11 // pred_check_branch
          %523 = sbr.rel (%p521) target = $region56
        $region55: #{tpu_custom_call.1} parent=11 // pred_region
          _
        $region56: #{tpu_custom_call.1} parent=11 // pred_fallthru
          _
        // Predicated region
        $region57: #{tpu_custom_call.1} parent=11 // pred_check
          %p524 = pneg %p380
        $region58: #{tpu_custom_call.1} parent=11 // pred_check_branch
          %526 = sbr.rel (%p524) target = $region60
        $region59: #{tpu_custom_call.1} parent=11 // pred_region
          _
        $region60: #{tpu_custom_call.1} parent=11 // pred_fallthru
          _
      $region12: #{tpu_custom_call.1} parent=5 // pred_fallthru
        _
      %p527 = scmp.lt.s32.totalorder %s34, 2
      // Predicated region
      $region61: #{tpu_custom_call.1} parent=5 // pred_check
        %p528 = pneg %p527
      $region62: #{tpu_custom_call.1} parent=5 // pred_check_branch
        %530 = sbr.rel (%p528) target = $region64
      $region63: #{tpu_custom_call.1} parent=5 // pred_region
        // Predicated region
        $region65: #{tpu_custom_call.1} parent=63 // pred_check
          %p531 = pneg %p68
        $region66: #{tpu_custom_call.1} parent=63 // pred_check_branch
          %533 = sbr.rel (%p531) target = $region68
        $region67: #{tpu_custom_call.1} parent=63 // pred_region
          %s534 = sand.u32 %s58, 1
          %s535 = scalar_lea.sflag [#allocation6], %s534
          %s536 = sand.u32 %s58, 1
          %s537 = smul.addr %s536, 4
          %s538 = scalar_lea.vmem [#allocation5], %s537
          %s540 = ssub.s32 64, 64
          %541 = vsyncadd %s535, %s540
          %s542 = sadd.s32 %s42, %s41
          %s543 = smul.addr %s542, 64
          %s544 = scalar_lea.hbm %s0, %s543
          %s546 = sshll.u32 %s538, 4
          %s547 = int_to_ptr.vmem [resolvable:$true] %s546
          %549 = dma.hbm_to_vmem [thread:$0]  %s544, 64, %s547, %s535
        $region68: #{tpu_custom_call.1} parent=63 // pred_fallthru
          _
        // Predicated region
        $region69: #{tpu_custom_call.1} parent=63 // pred_check
          %p550 = pneg %p94
        $region70: #{tpu_custom_call.1} parent=63 // pred_check_branch
          %552 = sbr.rel (%p550) target = $region72
        $region71: #{tpu_custom_call.1} parent=63 // pred_region
          %s553 = sand.u32 %s34, 1
          %s554 = scalar_lea.sflag [#allocation9], %s553
          %s555 = sand.u32 %s84, 1
          %s556 = smul.addr %s555, 8
          %s557 = scalar_lea.vmem [#allocation8], %s556
          %s559 = ssub.s32 128, 128
          %560 = vsyncadd %s554, %s559
          %s561 = smul.addr %s41, 2
          %s562 = smul.addr %s561, 64
          %s563 = scalar_lea.hbm %s1, %s562
          %s564 = sshll.u32 %s557, 4
          %s565 = int_to_ptr.vmem [resolvable:$true] %s564
          %570 = dma.hbm_to_vmem [thread:$0]  %s563, 128, %s565, %s554, 64, 64, 4
        $region72: #{tpu_custom_call.1} parent=63 // pred_fallthru
          _
        // Predicated region
        $region73: #{tpu_custom_call.1} parent=63 // pred_check
          %p571 = pneg %p122
        $region74: #{tpu_custom_call.1} parent=63 // pred_check_branch
          %573 = sbr.rel (%p571) target = $region76
        $region75: #{tpu_custom_call.1} parent=63 // pred_region
          %s574 = sand.u32 %s34, 1
          %s575 = scalar_lea.sflag [#allocation9], %s574
          %s576 = sand.u32 %s112, 1
          %s577 = smul.addr %s576, 2
          %s578 = scalar_lea.vmem [#allocation10], %s577
          %s580 = ssub.s32 32, 32
          %581 = vsyncadd %s575, %s580
          %s582 = sadd.s32 %s42, %s41
          %s583 = smul.addr %s582, 32
          %s584 = scalar_lea.hbm %s2, %s583
          %s586 = sshll.u32 %s578, 4
          %s587 = int_to_ptr.vmem [resolvable:$true] %s586
          %589 = dma.hbm_to_vmem [thread:$0]  %s584, 32, %s587, %s575
        $region76: #{tpu_custom_call.1} parent=63 // pred_fallthru
          _
      $region64: #{tpu_custom_call.1} parent=5 // pred_fallthru
        _
      %p590 = scmp.le.s32.totalorder 1, %s34
      %p591 = scmp.lt.s32.totalorder %s34, 3
      %p592 = pnand %p590, %p591
      %p593 = pneg %p592
      // Predicated region
      $region77: #{tpu_custom_call.1} parent=5 // pred_check
        _
      $region78: #{tpu_custom_call.1} parent=5 // pred_check_branch
        %595 = sbr.rel (%p592) target = $region80
      $region79: #{tpu_custom_call.1} parent=5 // pred_region
        %s596 = ssub.s32 %s34, 1
        %s597 = sand.u32 %s61, 1
        %s598 = scalar_lea.sflag [#allocation6], %s597
        %s599 = sand.u32 %s61, 1
        %s600 = smul.addr %s599, 4
        %s601 = scalar_lea.vmem [#allocation5], %s600
        // Predicated region
        $region81: #{tpu_custom_call.1} parent=79 // pred_check
          %p602 = pneg %p74
        $region82: #{tpu_custom_call.1} parent=79 // pred_check_branch
          %604 = sbr.rel (%p602) target = $region84
        $region83: #{tpu_custom_call.1} parent=79 // pred_region
          %605 = dma.done %s598, 64
        $region84: #{tpu_custom_call.1} parent=79 // pred_fallthru
          _
        %s606 = sand.u32 %s39, 1
        %s607 = scalar_lea.sflag [#allocation9], %s606
        %s608 = sand.u32 %s87, 1
        %s609 = smul.addr %s608, 8
        %s610 = scalar_lea.vmem [#allocation8], %s609
        // Predicated region
        $region85: #{tpu_custom_call.1} parent=79 // pred_check
          %p611 = pneg %p100
        $region86: #{tpu_custom_call.1} parent=79 // pred_check_branch
          %613 = sbr.rel (%p611) target = $region88
        $region87: #{tpu_custom_call.1} parent=79 // pred_region
          %614 = dma.done %s607, 128
        $region88: #{tpu_custom_call.1} parent=79 // pred_fallthru
          _
        %s615 = sand.u32 %s39, 1
        %s616 = scalar_lea.sflag [#allocation9], %s615
        %s617 = sand.u32 %s115, 1
        %s618 = smul.addr %s617, 2
        %s619 = scalar_lea.vmem [#allocation10], %s618
        // Predicated region
        $region89: #{tpu_custom_call.1} parent=79 // pred_check
          %p620 = pneg %p128
        $region90: #{tpu_custom_call.1} parent=79 // pred_check_branch
          %622 = sbr.rel (%p620) target = $region92
        $region91: #{tpu_custom_call.1} parent=79 // pred_region
          %623 = dma.done %s616, 32
        $region92: #{tpu_custom_call.1} parent=79 // pred_fallthru
          _
        // Predicated region
        $region93: #{tpu_custom_call.1} parent=79 // pred_check
          %p624 = pneg %p170
        $region94: #{tpu_custom_call.1} parent=79 // pred_check_branch
          %626 = sbr.rel (%p624) target = $region96
        $region95: #{tpu_custom_call.1} parent=79 // pred_region
          %627 = dma.done [#allocation12], 16
        $region96: #{tpu_custom_call.1} parent=79 // pred_fallthru
          _
        // Predicated region
        $region97: #{tpu_custom_call.1} parent=79 // pred_check
          %p628 = pneg %p191
        $region98: #{tpu_custom_call.1} parent=79 // pred_check_branch
          %630 = sbr.rel (%p628) target = $region100
        $region99: #{tpu_custom_call.1} parent=79 // pred_region
          %631 = dma.done [#allocation12], 16
        $region100: #{tpu_custom_call.1} parent=79 // pred_fallthru
          _
        // Predicated region
        $region101: #{tpu_custom_call.1} parent=79 // pred_check
          %p632 = pneg %p212
        $region102: #{tpu_custom_call.1} parent=79 // pred_check_branch
          %634 = sbr.rel (%p632) target = $region104
        $region103: #{tpu_custom_call.1} parent=79 // pred_region
          %635 = dma.done [#allocation15], 16
        $region104: #{tpu_custom_call.1} parent=79 // pred_fallthru
          _
        // Predicated region
        $region105: #{tpu_custom_call.1} parent=79 // pred_check
          %p636 = pneg %p254
        $region106: #{tpu_custom_call.1} parent=79 // pred_check_branch
          %638 = sbr.rel (%p636) target = $region108
        $region107: #{tpu_custom_call.1} parent=79 // pred_region
          %639 = dma.done [#allocation15], 16
        $region108: #{tpu_custom_call.1} parent=79 // pred_fallthru
          _
        // Predicated region
        $region109: #{tpu_custom_call.1} parent=79 // pred_check
          %p640 = pneg %p275
        $region110: #{tpu_custom_call.1} parent=79 // pred_check_branch
          %642 = sbr.rel (%p640) target = $region112
        $region111: #{tpu_custom_call.1} parent=79 // pred_region
          %643 = dma.done [#allocation18], 192
        $region112: #{tpu_custom_call.1} parent=79 // pred_fallthru
          _
        // Predicated region
        $region113: #{tpu_custom_call.1} parent=79 // pred_check
          %p644 = pneg %p296
        $region114: #{tpu_custom_call.1} parent=79 // pred_check_branch
          %646 = sbr.rel (%p644) target = $region116
        $region115: #{tpu_custom_call.1} parent=79 // pred_region
          %647 = dma.done [#allocation18], 16
        $region116: #{tpu_custom_call.1} parent=79 // pred_fallthru
          _
        // Predicated region
        $region117: #{tpu_custom_call.1} parent=79 // pred_check
          %p648 = pneg %p317
        $region118: #{tpu_custom_call.1} parent=79 // pred_check_branch
          %650 = sbr.rel (%p648) target = $region120
        $region119: #{tpu_custom_call.1} parent=79 // pred_region
          %651 = dma.done [#allocation21], 192
        $region120: #{tpu_custom_call.1} parent=79 // pred_fallthru
          _
        // Predicated region
        $region121: #{tpu_custom_call.1} parent=79 // pred_check
          %p652 = pneg %p338
        $region122: #{tpu_custom_call.1} parent=79 // pred_check_branch
          %654 = sbr.rel (%p652) target = $region124
        $region123: #{tpu_custom_call.1} parent=79 // pred_region
          %655 = dma.done [#allocation21], 16
        $region124: #{tpu_custom_call.1} parent=79 // pred_fallthru
          _
        %s656 = sand.u32 %s61, 1
        %s657 = scalar_lea.sflag [#allocation6], %s656
        %s658 = sand.u32 %s61, 1
        %s659 = smul.addr %s658, 4
        %s660 = scalar_lea.vmem [#allocation5], %s659
        %p661 = pneg %p74
        %p662 = pneg %p71
        %s663 = sand.u32 %s39, 1
        %s664 = scalar_lea.sflag [#allocation9], %s663
        %s665 = sand.u32 %s87, 1
        %s666 = smul.addr %s665, 8
        %s667 = scalar_lea.vmem [#allocation8], %s666
        %p668 = pneg %p100
        %p669 = pneg %p97
        %s670 = sand.u32 %s39, 1
        %s671 = scalar_lea.sflag [#allocation9], %s670
        %s672 = sand.u32 %s115, 1
        %s673 = smul.addr %s672, 2
        %s674 = scalar_lea.vmem [#allocation10], %s673
        %p675 = pneg %p128
        %p676 = pneg %p125
        %p677 = pneg %p149
        %p678 = pneg %p146
        %p679 = pneg %p170
        %p680 = pneg %p167
        %p681 = pneg %p191
        %p682 = pneg %p188
        %p683 = pneg %p212
        %p684 = pneg %p209
        %p685 = pneg %p233
        %p686 = pneg %p230
        %p687 = pneg %p254
        %p688 = pneg %p251
        %p689 = pneg %p275
        %p690 = pneg %p272
        %p691 = pneg %p296
        %p692 = pneg %p293
        %p693 = pneg %p317
        %p694 = pneg %p314
        %p695 = pneg %p338
        %p696 = pneg %p335
        %p697 = pneg %p359
        %p698 = pneg %p356
        %p699 = pneg %p380
        %p700 = pneg %p377
        %p701 = pneg %p408
        %p702 = pneg %p405
        %s703 = sand.u32 %s395, 1
        %s704 = scalar_lea.sflag [#allocation7], %s703
        %s705 = sand.u32 %s395, 1
        %s706 = smul.addr %s705, 8
        %s707 = scalar_lea.vmem [#allocation23], %s706
        %p711 = scmp.eq.s32.totalorder %s44, 0
        // Predicated region
        $region125: #{tpu_custom_call.1} parent=79 // pred_check
          %p712 = pneg %p711
        $region126: #{tpu_custom_call.1} parent=79 // pred_check_branch
          %714 = sbr.rel (%p712) target = $region128
        $region127: #{tpu_custom_call.1} parent=79 // pred_region
          %v715 = vld [vmem:[%s610] sm:$0xf]
          %v716 = vld [vmem:[%s610 + $0x4] sm:$0xf]
          %v717 = vunpack.c.l.bf16 %v715
          %v718 = vunpack.c.l.bf16 %v716
          %v719 = vld [vmem:[#allocation13] sm:$0x1]
          %v720 = vld [vmem:[#allocation14] sm:$0x1]
          %vm721 = vcmask 195584
          %v722 = vsel %vm721, %v717, 0.0
          %723 = vadd.xlane.f32.xlu0 %v722
          %v724 = vpop.xlane.xlu0 %723
          %v725 = vsel %vm721, %v718, 0.0
          %726 = vadd.xlane.f32.xlu0 %v725
          %v727 = vpop.xlane.xlu0 %726
          %v728 = vrcp.pop 24.0
          %v729 = vmul.f32 %v724, %v728
          %v730 = vmul.f32 %v727, %v728
          %v731 = vsub.f32 %v717, %v729
          %v732 = vsub.f32 %v718, %v730
          %v733 = vmul.f32 %v731, %v731
          %v734 = vmul.f32 %v732, %v732
          %v735 = vsel %vm721, %v733, 0.0
          %736 = vadd.xlane.f32.xlu0 %v735
          %v737 = vpop.xlane.xlu0 %736
          %v738 = vsel %vm721, %v734, 0.0
          %739 = vadd.xlane.f32.xlu0 %v738
          %v740 = vpop.xlane.xlu0 %739
          %v741 = vmul.f32 %v737, %v728
          %v742 = vmul.f32 %v740, %v728
          %v743 = vadd.f32 %v741, 1e-05
          %v744 = vadd.f32 %v742, 1e-05
          %v745 = vrsqrt.pop %v743
          %v746 = vrsqrt.pop %v744
          %v747 = vmul.f32 %v731, %v745
          %v748 = vmul.f32 %v732, %v746
          %v750 = vlaneseq
          %v751 = vshrl.u32 %v750, 7
          %v752 = vsub.s32 0, %v751
          %v753 = vrot.slane %v719, %v752
          %v755 = vmul.f32 %v747, %v753
          %v756 = vmul.f32 %v748, %v753
          %v758 = vlaneseq
          %v759 = vshrl.u32 %v758, 7
          %v760 = vsub.s32 0, %v759
          %v761 = vrot.slane %v720, %v760
          %v763 = vadd.f32 %v755, %v761
          %v764 = vadd.f32 %v756, %v761
          %v765 = vpack.c.bf16 %v764, %v763
          %v766 = vld [vmem:[#allocation17] sm:$0xf]
          %v767 = vld [vmem:[#allocation17 + $0x4] sm:$0xf]
          %v768 = vld [vmem:[#allocation17 + $0x8] sm:$0xf]
          %v769 = vld [vmem:[#allocation19] sm:$0x1]
          %v771 = vlaneseq
          %v772 = vshrl.u32 %v771, 7
          %v773 = vsub.s32 0, %v772
          %v774 = vrot.slane %v769, %v773
          %v779 = vunpack.c.l.b16 %v766
          %v780 = vunpack.c.l.b16 %v767
          %v781 = vunpack.c.l.b16 %v768
          %v782 = vpack.c.b16 %v780, %v779
          %v783 = vpack.c.b16 %v781, %v781
          %v786 = vsel %vm721, %v765, 0
          %vm788 = vcmask 1043456
          %v790 = vsel %vm788, %v783, 0
          %792 = vmatprep.subr.bf16.mxu0 0
          %793 = vmatpush1.bf16.msra.mxu0 %v782
          %794 = vmatprep.subr.bf16.mxu0 0
          %795 = vmatpush1.bf16.msra.mxu0 %v790
          %796 = vmatprep.subr.bf16.mxu0 0
          %797 = vmatpush1.bf16.msra.mxu0 0
          %798 = vmatprep.subr.bf16.mxu0 0
          %799 = vmatpush1.bf16.msra.mxu0 0
          %800 = vmatprep.subr.bf16.mxu0 0
          %801 = vmatpush1.bf16.msra.mxu0 0
          %802 = vmatprep.subr.bf16.mxu0 0
          %803 = vmatpush1.bf16.msra.mxu0 0
          %804 = vmatprep.subr.bf16.mxu0 0
          %805 = vmatpush1.bf16.msra.mxu0 0
          %806 = vmatprep.subr.bf16.mxu0 0
          %807 = vmatpush1.bf16.msra.mxu0 0
          %808 = vmatprep.subr.bf16.mxu0 0
          %809 = vmatpush1.bf16.msra.mxu0 0
          %810 = vmatprep.subr.bf16.mxu0 0
          %811 = vmatpush1.bf16.msra.mxu0 0
          %812 = vmatprep.subr.bf16.mxu0 0
          %813 = vmatpush1.bf16.msra.mxu0 0
          %814 = vmatprep.subr.bf16.mxu0 0
          %815 = vmatpush1.bf16.msra.mxu0 0
          %816 = vmatprep.subr.bf16.mxu0 0
          %817 = vmatpush1.bf16.msra.mxu0 0
          %818 = vmatprep.subr.bf16.mxu0 0
          %819 = vmatpush1.bf16.msra.mxu0 0
          %820 = vmatprep.subr.bf16.mxu0 0
          %821 = vmatpush1.bf16.msra.mxu0 0
          %822 = vmatprep.subr.bf16.mxu0 0
          %823 = vmatpush1.bf16.msra.mxu0 0
          %824 = vmatprep.mubr.bf16.mxu0 0
          %825 = vmatmul.mubr.bf16.gmra.mrb[0].mxu0 %v786
          %v826 = vpop.f32.mrb[0].mxu0
          %v827 = vadd.f32 %v774, %v826
          %v828 = vpop.f32.mrb[0].mxu0
          %v829 = vpop.f32.mrb[0].mxu0
          %v830 = vadd.f32 %v774, %v829
          %v831 = vpop.f32.mrb[0].mxu0
          %832 = vdwg.mxu0
          %v833 = vpack.c.bf16 %v830, %v827
          %vm834 = vcmask 523264
          %835 = vst.msk [vmem:[#allocation2] sm:$0xff] %vm834, %v833
          %v836 = vld [vmem:[#allocation20] sm:$0xf]
          %v837 = vld [vmem:[#allocation20 + $0x4] sm:$0xf]
          %v838 = vld [vmem:[#allocation20 + $0x8] sm:$0xf]
          %v839 = vld [vmem:[#allocation22] sm:$0x1]
          %v841 = vlaneseq
          %v842 = vshrl.u32 %v841, 7
          %v843 = vsub.s32 0, %v842
          %v844 = vrot.slane %v839, %v843
          %v849 = vunpack.c.l.b16 %v836
          %v850 = vunpack.c.l.b16 %v837
          %v851 = vunpack.c.l.b16 %v838
          %v852 = vpack.c.b16 %v850, %v849
          %v853 = vpack.c.b16 %v851, %v851
          %v856 = vsel %vm788, %v853, 0
          %858 = vmatprep.subr.bf16.mxu0 0
          %859 = vmatpush1.bf16.msra.mxu0 %v852
          %860 = vmatprep.subr.bf16.mxu0 0
          %861 = vmatpush1.bf16.msra.mxu0 %v856
          %862 = vmatprep.subr.bf16.mxu0 0
          %863 = vmatpush1.bf16.msra.mxu0 0
          %864 = vmatprep.subr.bf16.mxu0 0
          %865 = vmatpush1.bf16.msra.mxu0 0
          %866 = vmatprep.subr.bf16.mxu0 0
          %867 = vmatpush1.bf16.msra.mxu0 0
          %868 = vmatprep.subr.bf16.mxu0 0
          %869 = vmatpush1.bf16.msra.mxu0 0
          %870 = vmatprep.subr.bf16.mxu0 0
          %871 = vmatpush1.bf16.msra.mxu0 0
          %872 = vmatprep.subr.bf16.mxu0 0
          %873 = vmatpush1.bf16.msra.mxu0 0
          %874 = vmatprep.subr.bf16.mxu0 0
          %875 = vmatpush1.bf16.msra.mxu0 0
          %876 = vmatprep.subr.bf16.mxu0 0
          %877 = vmatpush1.bf16.msra.mxu0 0
          %878 = vmatprep.subr.bf16.mxu0 0
          %879 = vmatpush1.bf16.msra.mxu0 0
          %880 = vmatprep.subr.bf16.mxu0 0
          %881 = vmatpush1.bf16.msra.mxu0 0
          %882 = vmatprep.subr.bf16.mxu0 0
          %883 = vmatpush1.bf16.msra.mxu0 0
          %884 = vmatprep.subr.bf16.mxu0 0
          %885 = vmatpush1.bf16.msra.mxu0 0
          %886 = vmatprep.subr.bf16.mxu0 0
          %887 = vmatpush1.bf16.msra.mxu0 0
          %888 = vmatprep.subr.bf16.mxu0 0
          %889 = vmatpush1.bf16.msra.mxu0 0
          %890 = vmatprep.mubr.bf16.mxu0 0
          %891 = vmatmul.mubr.bf16.gmra.mrb[0].mxu0 %v786
          %v892 = vpop.f32.mrb[0].mxu0
          %v893 = vadd.f32 %v844, %v892
          %v894 = vpop.f32.mrb[0].mxu0
          %v895 = vpop.f32.mrb[0].mxu0
          %v896 = vadd.f32 %v844, %v895
          %v897 = vpop.f32.mrb[0].mxu0
          %898 = vdwg.mxu0
          %v899 = vpack.c.bf16 %v896, %v893
          %900 = vst.msk [vmem:[#allocation3] sm:$0xff] %vm834, %v899
        $region128: #{tpu_custom_call.1} parent=79 // pred_fallthru
          _
        %v901 = vld [vmem:[%s601] sm:$0xf]
        %v902 = vunpack.c.l.bf16 %v901
        %v903 = vld [vmem:[%s3] sm:$0x1]
        %v904 = vld [vmem:[#allocation11] sm:$0x1]
        %vm905 = vcmask 261120
        %v906 = vsel %vm905, %v902, 0.0
        %907 = vadd.xlane.f32.xlu0 %v906
        %v908 = vpop.xlane.xlu0 %907
        %v909 = vrcp.pop 32.0
        %v910 = vmul.f32 %v908, %v909
        %v911 = vsub.f32 %v902, %v910
        %v912 = vmul.f32 %v911, %v911
        %v913 = vsel %vm905, %v912, 0.0
        %914 = vadd.xlane.f32.xlu0 %v913
        %v915 = vpop.xlane.xlu0 %914
        %v916 = vmul.f32 %v915, %v909
        %v917 = vadd.f32 %v916, 1e-05
        %v918 = vrsqrt.pop %v917
        %v919 = vmul.f32 %v911, %v918
        %v921 = vlaneseq
        %v922 = vshrl.u32 %v921, 7
        %v923 = vsub.s32 0, %v922
        %v924 = vrot.slane %v903, %v923
        %v926 = vmul.f32 %v919, %v924
        %v928 = vlaneseq
        %v929 = vshrl.u32 %v928, 7
        %v930 = vsub.s32 0, %v929
        %v931 = vrot.slane %v904, %v930
        %v933 = vadd.f32 %v926, %v931
        %v934 = vpack.c.bf16 %v933, %v933
        %v935 = vld [vmem:[%s7] sm:$0xf]
        %v936 = vld [vmem:[%s7 + $0x4] sm:$0xf]
        %v937 = vld [vmem:[%s7 + $0x8] sm:$0xf]
        %v938 = vld [vmem:[%s7 + $0xc] sm:$0xf]
        %v939 = vld [vmem:[#allocation16] sm:$0x1]
        %v941 = vlaneseq
        %v942 = vshrl.u32 %v941, 7
        %v943 = vsub.s32 0, %v942
        %v944 = vrot.slane %v939, %v943
        %v950 = vunpack.c.l.b16 %v935
        %v951 = vunpack.c.l.b16 %v936
        %v952 = vunpack.c.l.b16 %v937
        %v953 = vunpack.c.l.b16 %v938
        %v954 = vpack.c.b16 %v951, %v950
        %v955 = vpack.c.b16 %v953, %v952
        %v959 = vsel %vm905, %v934, 0
        %961 = vmatprep.subr.bf16.mxu0 0
        %962 = vmatpush1.bf16.msra.mxu0 %v954
        %963 = vmatprep.subr.bf16.mxu0 0
        %964 = vmatpush1.bf16.msra.mxu0 %v955
        %965 = vmatprep.subr.bf16.mxu0 0
        %966 = vmatpush1.bf16.msra.mxu0 0
        %967 = vmatprep.subr.bf16.mxu0 0
        %968 = vmatpush1.bf16.msra.mxu0 0
        %969 = vmatprep.subr.bf16.mxu0 0
        %970 = vmatpush1.bf16.msra.mxu0 0
        %971 = vmatprep.subr.bf16.mxu0 0
        %972 = vmatpush1.bf16.msra.mxu0 0
        %973 = vmatprep.subr.bf16.mxu0 0
        %974 = vmatpush1.bf16.msra.mxu0 0
        %975 = vmatprep.subr.bf16.mxu0 0
        %976 = vmatpush1.bf16.msra.mxu0 0
        %977 = vmatprep.subr.bf16.mxu0 0
        %978 = vmatpush1.bf16.msra.mxu0 0
        %979 = vmatprep.subr.bf16.mxu0 0
        %980 = vmatpush1.bf16.msra.mxu0 0
        %981 = vmatprep.subr.bf16.mxu0 0
        %982 = vmatpush1.bf16.msra.mxu0 0
        %983 = vmatprep.subr.bf16.mxu0 0
        %984 = vmatpush1.bf16.msra.mxu0 0
        %985 = vmatprep.subr.bf16.mxu0 0
        %986 = vmatpush1.bf16.msra.mxu0 0
        %987 = vmatprep.subr.bf16.mxu0 0
        %988 = vmatpush1.bf16.msra.mxu0 0
        %989 = vmatprep.subr.bf16.mxu0 0
        %990 = vmatpush1.bf16.msra.mxu0 0
        %991 = vmatprep.subr.bf16.mxu0 0
        %992 = vmatpush1.bf16.msra.mxu0 0
        %993 = vmatprep.mubr.bf16.mxu0 0
        %994 = vmatmul.mubr.bf16.gmra.mrb[0].mxu0 %v959
        %v995 = vpop.f32.mrb[0].mxu0
        %v996 = vadd.f32 %v944, %v995
        %v997 = vpop.f32.mrb[0].mxu0
        %v998 = vpop.f32.mrb[0].mxu0
        %v999 = vpop.f32.mrb[0].mxu0
        %1000 = vdwg.mxu0
        %v1001 = vpack.c.bf16 %v996, %v996
        %v1002 = vld [vmem:[%s619] sm:$0x3]
        %vm1003 = vnez %v1002
        %v1004 = vld [vmem:[#allocation2] sm:$0xff]
        %v1005 = vld [vmem:[#allocation3] sm:$0xff]
        %vm1006 = vcmask 130048
        %v1008 = vsel %vm1006, %v1001, 0
        %v1011 = vsel %vm1006, %v1004, 0
        %1013 = vmatprep.subr.bf16.mxu0 0
        %1014 = vmatpush1.bf16.xpose.msra.mxu0 %v1011
        %1015 = vmatprep.subr.bf16.mxu0 0
        %1016 = vmatpush1.bf16.xpose.msra.mxu0 0
        %1017 = vmatprep.subr.bf16.mxu0 0
        %1018 = vmatpush1.bf16.xpose.msra.mxu0 0
        %1019 = vmatprep.subr.bf16.mxu0 0
        %1020 = vmatpush1.bf16.xpose.msra.mxu0 0
        %1021 = vmatprep.subr.bf16.mxu0 0
        %1022 = vmatpush1.bf16.xpose.msra.mxu0 0
        %1023 = vmatprep.subr.bf16.mxu0 0
        %1024 = vmatpush1.bf16.xpose.msra.mxu0 0
        %1025 = vmatprep.subr.bf16.mxu0 0
        %1026 = vmatpush1.bf16.xpose.msra.mxu0 0
        %1027 = vmatprep.subr.bf16.mxu0 0
        %1028 = vmatpush1.bf16.xpose.msra.mxu0 0
        %1029 = vmatprep.subr.bf16.mxu0 0
        %1030 = vmatpush1.bf16.xpose.msra.mxu0 0
        %1031 = vmatprep.subr.bf16.mxu0 0
        %1032 = vmatpush1.bf16.xpose.msra.mxu0 0
        %1033 = vmatprep.subr.bf16.mxu0 0
        %1034 = vmatpush1.bf16.xpose.msra.mxu0 0
        %1035 = vmatprep.subr.bf16.mxu0 0
        %1036 = vmatpush1.bf16.xpose.msra.mxu0 0
        %1037 = vmatprep.subr.bf16.mxu0 0
        %1038 = vmatpush1.bf16.xpose.msra.mxu0 0
        %1039 = vmatprep.subr.bf16.mxu0 0
        %1040 = vmatpush1.bf16.xpose.msra.mxu0 0
        %1041 = vmatprep.subr.bf16.mxu0 0
        %1042 = vmatpush1.bf16.xpose.msra.mxu0 0
        %1043 = vmatprep.subr.bf16.mxu0 0
        %1044 = vmatpush1.bf16.xpose.msra.mxu0 0
        %1045 = vmatprep.mubr.bf16.mxu0 0
        %1046 = vmatmul.mubr.bf16.gmra.mrb[0].mxu0 %v1008
        %v1047 = vpop.f32.mrb[0].mxu0
        %v1048 = vadd.f32 0.0, %v1047
        %v1049 = vpop.f32.mrb[0].mxu0
        %v1050 = vpop.f32.mrb[0].mxu0
        %v1051 = vpop.f32.mrb[0].mxu0
        %1052 = vdwg.mxu0
        %v1053 = vsel %vm1003, 16843009, 0
        %v1054 = vunpack.c.0.s8 %v1053
        %vm1055 = vcmp.ne.s32.totalorder %v1054, 0
        %v1056 = vsel %vm1055, %v1048, -1e+30
        %v1057 = vsel %vm1006, %v1056, -inf
        %1058 = vmax.xlane.f32.xlu0 %v1057
        %v1059 = vpop.xlane.xlu0 %1058
        %v1060 = vsub.f32 %v1056, %v1059
        %v1061 = vmul.f32 %v1060, 1.442695
        %v1062 = vpow.pop %v1061
        %v1063 = vsel %vm1006, %v1062, 0.0
        %1064 = vadd.xlane.f32.xlu0 %v1063
        %v1065 = vpop.xlane.xlu0 %1064
        %v1066 = vrcp.pop %v1065
        %v1067 = vmul.f32 %v1062, %v1066
        %v1068 = vpack.c.bf16 %v1067, %v1067
        %v1070 = vsel %vm1006, %v1068, 0
        %1072 = vmatprep.subr.bf16.mxu0 0
        %1073 = vmatpush1.bf16.msra.mxu0 %v1005
        %1074 = vmatprep.subr.bf16.mxu0 0
        %1075 = vmatpush1.bf16.msra.mxu0 0
        %1076 = vmatprep.subr.bf16.mxu0 0
        %1077 = vmatpush1.bf16.msra.mxu0 0
        %1078 = vmatprep.subr.bf16.mxu0 0
        %1079 = vmatpush1.bf16.msra.mxu0 0
        %1080 = vmatprep.subr.bf16.mxu0 0
        %1081 = vmatpush1.bf16.msra.mxu0 0
        %1082 = vmatprep.subr.bf16.mxu0 0
        %1083 = vmatpush1.bf16.msra.mxu0 0
        %1084 = vmatprep.subr.bf16.mxu0 0
        %1085 = vmatpush1.bf16.msra.mxu0 0
        %1086 = vmatprep.subr.bf16.mxu0 0
        %1087 = vmatpush1.bf16.msra.mxu0 0
        %1088 = vmatprep.subr.bf16.mxu0 0
        %1089 = vmatpush1.bf16.msra.mxu0 0
        %1090 = vmatprep.subr.bf16.mxu0 0
        %1091 = vmatpush1.bf16.msra.mxu0 0
        %1092 = vmatprep.subr.bf16.mxu0 0
        %1093 = vmatpush1.bf16.msra.mxu0 0
        %1094 = vmatprep.subr.bf16.mxu0 0
        %1095 = vmatpush1.bf16.msra.mxu0 0
        %1096 = vmatprep.subr.bf16.mxu0 0
        %1097 = vmatpush1.bf16.msra.mxu0 0
        %1098 = vmatprep.subr.bf16.mxu0 0
        %1099 = vmatpush1.bf16.msra.mxu0 0
        %1100 = vmatprep.subr.bf16.mxu0 0
        %1101 = vmatpush1.bf16.msra.mxu0 0
        %1102 = vmatprep.subr.bf16.mxu0 0
        %1103 = vmatpush1.bf16.msra.mxu0 0
        %1104 = vmatprep.mubr.bf16.mxu0 0
        %1105 = vmatmul.mubr.bf16.gmra.mrb[0].mxu0 %v1070
        %v1106 = vpop.f32.mrb[0].mxu0
        %v1107 = vadd.f32 0.0, %v1106
        %v1108 = vpop.f32.mrb[0].mxu0
        %v1109 = vpop.f32.mrb[0].mxu0
        %v1110 = vpop.f32.mrb[0].mxu0
        %1111 = vdwg.mxu0
        %v1112 = vpack.c.bf16 %v1107, %v1107
        %vm1113 = vcmask 125952
        %1114 = vst.msk [vmem:[#allocation4] sm:$0xf] %vm1113, %v1112
        %1116 = vrot.lane.b32.xlu0 %v1001, 112
        %v1117 = vpop.permute.xlu0 %1116
        %1119 = vrot.lane.b32.xlu0 %v1004, 112
        %v1120 = vpop.permute.xlu0 %1119
        %v1122 = vsel %vm1006, %v1117, 0
        %v1125 = vsel %vm1006, %v1120, 0
        %1127 = vmatprep.subr.bf16.mxu0 0
        %1128 = vmatpush1.bf16.xpose.msra.mxu0 %v1125
        %1129 = vmatprep.subr.bf16.mxu0 0
        %1130 = vmatpush1.bf16.xpose.msra.mxu0 0
        %1131 = vmatprep.subr.bf16.mxu0 0
        %1132 = vmatpush1.bf16.xpose.msra.mxu0 0
        %1133 = vmatprep.subr.bf16.mxu0 0
        %1134 = vmatpush1.bf16.xpose.msra.mxu0 0
        %1135 = vmatprep.subr.bf16.mxu0 0
        %1136 = vmatpush1.bf16.xpose.msra.mxu0 0
        %1137 = vmatprep.subr.bf16.mxu0 0
        %1138 = vmatpush1.bf16.xpose.msra.mxu0 0
        %1139 = vmatprep.subr.bf16.mxu0 0
        %1140 = vmatpush1.bf16.xpose.msra.mxu0 0
        %1141 = vmatprep.subr.bf16.mxu0 0
        %1142 = vmatpush1.bf16.xpose.msra.mxu0 0
        %1143 = vmatprep.subr.bf16.mxu0 0
        %1144 = vmatpush1.bf16.xpose.msra.mxu0 0
        %1145 = vmatprep.subr.bf16.mxu0 0
        %1146 = vmatpush1.bf16.xpose.msra.mxu0 0
        %1147 = vmatprep.subr.bf16.mxu0 0
        %1148 = vmatpush1.bf16.xpose.msra.mxu0 0
        %1149 = vmatprep.subr.bf16.mxu0 0
        %1150 = vmatpush1.bf16.xpose.msra.mxu0 0
        %1151 = vmatprep.subr.bf16.mxu0 0
        %1152 = vmatpush1.bf16.xpose.msra.mxu0 0
        %1153 = vmatprep.subr.bf16.mxu0 0
        %1154 = vmatpush1.bf16.xpose.msra.mxu0 0
        %1155 = vmatprep.subr.bf16.mxu0 0
        %1156 = vmatpush1.bf16.xpose.msra.mxu0 0
        %1157 = vmatprep.subr.bf16.mxu0 0
        %1158 = vmatpush1.bf16.xpose.msra.mxu0 0
        %1159 = vmatprep.mubr.bf16.mxu0 0
        %1160 = vmatmul.mubr.bf16.gmra.mrb[0].mxu0 %v1122
        %v1161 = vpop.f32.mrb[0].mxu0
        %v1162 = vadd.f32 0.0, %v1161
        %v1163 = vpop.f32.mrb[0].mxu0
        %v1164 = vpop.f32.mrb[0].mxu0
        %v1165 = vpop.f32.mrb[0].mxu0
        %1166 = vdwg.mxu0
        %v1167 = vsel %vm1055, %v1162, -1e+30
        %v1168 = vsel %vm1006, %v1167, -inf
        %1169 = vmax.xlane.f32.xlu0 %v1168
        %v1170 = vpop.xlane.xlu0 %1169
        %v1171 = vsub.f32 %v1167, %v1170
        %v1172 = vmul.f32 %v1171, 1.442695
        %v1173 = vpow.pop %v1172
        %v1174 = vsel %vm1006, %v1173, 0.0
        %1175 = vadd.xlane.f32.xlu0 %v1174
        %v1176 = vpop.xlane.xlu0 %1175
        %v1177 = vrcp.pop %v1176
        %v1178 = vmul.f32 %v1173, %v1177
        %v1179 = vpack.c.bf16 %v1178, %v1178
        %1181 = vrot.lane.b32.xlu0 %v1005, 112
        %v1182 = vpop.permute.xlu0 %1181
        %v1185 = vsel %vm1006, %v1179, 0
        %1187 = vmatprep.subr.bf16.mxu0 0
        %1188 = vmatpush1.bf16.msra.mxu0 %v1182
        %1189 = vmatprep.subr.bf16.mxu0 0
        %1190 = vmatpush1.bf16.msra.mxu0 0
        %1191 = vmatprep.subr.bf16.mxu0 0
        %1192 = vmatpush1.bf16.msra.mxu0 0
        %1193 = vmatprep.subr.bf16.mxu0 0
        %1194 = vmatpush1.bf16.msra.mxu0 0
        %1195 = vmatprep.subr.bf16.mxu0 0
        %1196 = vmatpush1.bf16.msra.mxu0 0
        %1197 = vmatprep.subr.bf16.mxu0 0
        %1198 = vmatpush1.bf16.msra.mxu0 0
        %1199 = vmatprep.subr.bf16.mxu0 0
        %1200 = vmatpush1.bf16.msra.mxu0 0
        %1201 = vmatprep.subr.bf16.mxu0 0
        %1202 = vmatpush1.bf16.msra.mxu0 0
        %1203 = vmatprep.subr.bf16.mxu0 0
        %1204 = vmatpush1.bf16.msra.mxu0 0
        %1205 = vmatprep.subr.bf16.mxu0 0
        %1206 = vmatpush1.bf16.msra.mxu0 0
        %1207 = vmatprep.subr.bf16.mxu0 0
        %1208 = vmatpush1.bf16.msra.mxu0 0
        %1209 = vmatprep.subr.bf16.mxu0 0
        %1210 = vmatpush1.bf16.msra.mxu0 0
        %1211 = vmatprep.subr.bf16.mxu0 0
        %1212 = vmatpush1.bf16.msra.mxu0 0
        %1213 = vmatprep.subr.bf16.mxu0 0
        %1214 = vmatpush1.bf16.msra.mxu0 0
        %1215 = vmatprep.subr.bf16.mxu0 0
        %1216 = vmatpush1.bf16.msra.mxu0 0
        %1217 = vmatprep.subr.bf16.mxu0 0
        %1218 = vmatpush1.bf16.msra.mxu0 0
        %1219 = vmatprep.mubr.bf16.mxu0 0
        %1220 = vmatmul.mubr.bf16.gmra.mrb[0].mxu0 %v1185
        %v1221 = vpop.f32.mrb[0].mxu0
        %v1222 = vadd.f32 0.0, %v1221
        %v1223 = vpop.f32.mrb[0].mxu0
        %v1224 = vpop.f32.mrb[0].mxu0
        %v1225 = vpop.f32.mrb[0].mxu0
        %1226 = vdwg.mxu0
        %v1227 = vpack.c.bf16 %v1222, %v1222
        %v1229 = vunpack.c.l.b16 %v1227
        %v1230 = vpack.c.b16 %v1229, %v1229
        %1231 = vrot.lane.b32.xlu0 %v1230, 16
        %v1232 = vpop.permute.xlu0 %1231
        %vm1234 = vcmask 257152
        %1235 = vst.msk [vmem:[#allocation4] sm:$0xf] %vm1234, %v1232
        %1236 = vrot.lane.b32.xlu0 %v1001, 96
        %v1237 = vpop.permute.xlu0 %1236
        %1238 = vrot.lane.b32.xlu0 %v1004, 96
        %v1239 = vpop.permute.xlu0 %1238
        %v1241 = vsel %vm1006, %v1237, 0
        %v1244 = vsel %vm1006, %v1239, 0
        %1246 = vmatprep.subr.bf16.mxu0 0
        %1247 = vmatpush1.bf16.xpose.msra.mxu0 %v1244
        %1248 = vmatprep.subr.bf16.mxu0 0
        %1249 = vmatpush1.bf16.xpose.msra.mxu0 0
        %1250 = vmatprep.subr.bf16.mxu0 0
        %1251 = vmatpush1.bf16.xpose.msra.mxu0 0
        %1252 = vmatprep.subr.bf16.mxu0 0
        %1253 = vmatpush1.bf16.xpose.msra.mxu0 0
        %1254 = vmatprep.subr.bf16.mxu0 0
        %1255 = vmatpush1.bf16.xpose.msra.mxu0 0
        %1256 = vmatprep.subr.bf16.mxu0 0
        %1257 = vmatpush1.bf16.xpose.msra.mxu0 0
        %1258 = vmatprep.subr.bf16.mxu0 0
        %1259 = vmatpush1.bf16.xpose.msra.mxu0 0
        %1260 = vmatprep.subr.bf16.mxu0 0
        %1261 = vmatpush1.bf16.xpose.msra.mxu0 0
        %1262 = vmatprep.subr.bf16.mxu0 0
        %1263 = vmatpush1.bf16.xpose.msra.mxu0 0
        %1264 = vmatprep.subr.bf16.mxu0 0
        %1265 = vmatpush1.bf16.xpose.msra.mxu0 0
        %1266 = vmatprep.subr.bf16.mxu0 0
        %1267 = vmatpush1.bf16.xpose.msra.mxu0 0
        %1268 = vmatprep.subr.bf16.mxu0 0
        %1269 = vmatpush1.bf16.xpose.msra.mxu0 0
        %1270 = vmatprep.subr.bf16.mxu0 0
        %1271 = vmatpush1.bf16.xpose.msra.mxu0 0
        %1272 = vmatprep.subr.bf16.mxu0 0
        %1273 = vmatpush1.bf16.xpose.msra.mxu0 0
        %1274 = vmatprep.subr.bf16.mxu0 0
        %1275 = vmatpush1.bf16.xpose.msra.mxu0 0
        %1276 = vmatprep.subr.bf16.mxu0 0
        %1277 = vmatpush1.bf16.xpose.msra.mxu0 0
        %1278 = vmatprep.mubr.bf16.mxu0 0
        %1279 = vmatmul.mubr.bf16.gmra.mrb[0].mxu0 %v1241
        %v1280 = vpop.f32.mrb[0].mxu0
        %v1281 = vadd.f32 0.0, %v1280
        %v1282 = vpop.f32.mrb[0].mxu0
        %v1283 = vpop.f32.mrb[0].mxu0
        %v1284 = vpop.f32.mrb[0].mxu0
        %1285 = vdwg.mxu0
        %v1286 = vsel %vm1055, %v1281, -1e+30
        %v1287 = vsel %vm1006, %v1286, -inf
        %1288 = vmax.xlane.f32.xlu0 %v1287
        %v1289 = vpop.xlane.xlu0 %1288
        %v1290 = vsub.f32 %v1286, %v1289
        %v1291 = vmul.f32 %v1290, 1.442695
        %v1292 = vpow.pop %v1291
        %v1293 = vsel %vm1006, %v1292, 0.0
        %1294 = vadd.xlane.f32.xlu0 %v1293
        %v1295 = vpop.xlane.xlu0 %1294
        %v1296 = vrcp.pop %v1295
        %v1297 = vmul.f32 %v1292, %v1296
        %v1298 = vpack.c.bf16 %v1297, %v1297
        %1299 = vrot.lane.b32.xlu0 %v1005, 96
        %v1300 = vpop.permute.xlu0 %1299
        %v1303 = vsel %vm1006, %v1298, 0
        %1305 = vmatprep.subr.bf16.mxu0 0
        %1306 = vmatpush1.bf16.msra.mxu0 %v1300
        %1307 = vmatprep.subr.bf16.mxu0 0
        %1308 = vmatpush1.bf16.msra.mxu0 0
        %1309 = vmatprep.subr.bf16.mxu0 0
        %1310 = vmatpush1.bf16.msra.mxu0 0
        %1311 = vmatprep.subr.bf16.mxu0 0
        %1312 = vmatpush1.bf16.msra.mxu0 0
        %1313 = vmatprep.subr.bf16.mxu0 0
        %1314 = vmatpush1.bf16.msra.mxu0 0
        %1315 = vmatprep.subr.bf16.mxu0 0
        %1316 = vmatpush1.bf16.msra.mxu0 0
        %1317 = vmatprep.subr.bf16.mxu0 0
        %1318 = vmatpush1.bf16.msra.mxu0 0
        %1319 = vmatprep.subr.bf16.mxu0 0
        %1320 = vmatpush1.bf16.msra.mxu0 0
        %1321 = vmatprep.subr.bf16.mxu0 0
        %1322 = vmatpush1.bf16.msra.mxu0 0
        %1323 = vmatprep.subr.bf16.mxu0 0
        %1324 = vmatpush1.bf16.msra.mxu0 0
        %1325 = vmatprep.subr.bf16.mxu0 0
        %1326 = vmatpush1.bf16.msra.mxu0 0
        %1327 = vmatprep.subr.bf16.mxu0 0
        %1328 = vmatpush1.bf16.msra.mxu0 0
        %1329 = vmatprep.subr.bf16.mxu0 0
        %1330 = vmatpush1.bf16.msra.mxu0 0
        %1331 = vmatprep.subr.bf16.mxu0 0
        %1332 = vmatpush1.bf16.msra.mxu0 0
        %1333 = vmatprep.subr.bf16.mxu0 0
        %1334 = vmatpush1.bf16.msra.mxu0 0
        %1335 = vmatprep.subr.bf16.mxu0 0
        %1336 = vmatpush1.bf16.msra.mxu0 0
        %1337 = vmatprep.mubr.bf16.mxu0 0
        %1338 = vmatmul.mubr.bf16.gmra.mrb[0].mxu0 %v1303
        %v1339 = vpop.f32.mrb[0].mxu0
        %v1340 = vadd.f32 0.0, %v1339
        %v1341 = vpop.f32.mrb[0].mxu0
        %v1342 = vpop.f32.mrb[0].mxu0
        %v1343 = vpop.f32.mrb[0].mxu0
        %1344 = vdwg.mxu0
        %v1345 = vpack.c.bf16 %v1340, %v1340
        %v1347 = vunpack.c.l.b16 %v1345
        %v1348 = vpack.c.b16 %v1347, %v1347
        %1349 = vrot.lane.b32.xlu0 %v1348, 32
        %v1350 = vpop.permute.xlu0 %1349
        %vm1352 = vcmask 388352
        %1353 = vst.msk [vmem:[#allocation4] sm:$0xf] %vm1352, %v1350
        %1354 = vrot.lane.b32.xlu0 %v1001, 80
        %v1355 = vpop.permute.xlu0 %1354
        %1356 = vrot.lane.b32.xlu0 %v1004, 80
        %v1357 = vpop.permute.xlu0 %1356
        %v1359 = vsel %vm1006, %v1355, 0
        %v1362 = vsel %vm1006, %v1357, 0
        %1364 = vmatprep.subr.bf16.mxu0 0
        %1365 = vmatpush1.bf16.xpose.msra.mxu0 %v1362
        %1366 = vmatprep.subr.bf16.mxu0 0
        %1367 = vmatpush1.bf16.xpose.msra.mxu0 0
        %1368 = vmatprep.subr.bf16.mxu0 0
        %1369 = vmatpush1.bf16.xpose.msra.mxu0 0
        %1370 = vmatprep.subr.bf16.mxu0 0
        %1371 = vmatpush1.bf16.xpose.msra.mxu0 0
        %1372 = vmatprep.subr.bf16.mxu0 0
        %1373 = vmatpush1.bf16.xpose.msra.mxu0 0
        %1374 = vmatprep.subr.bf16.mxu0 0
        %1375 = vmatpush1.bf16.xpose.msra.mxu0 0
        %1376 = vmatprep.subr.bf16.mxu0 0
        %1377 = vmatpush1.bf16.xpose.msra.mxu0 0
        %1378 = vmatprep.subr.bf16.mxu0 0
        %1379 = vmatpush1.bf16.xpose.msra.mxu0 0
        %1380 = vmatprep.subr.bf16.mxu0 0
        %1381 = vmatpush1.bf16.xpose.msra.mxu0 0
        %1382 = vmatprep.subr.bf16.mxu0 0
        %1383 = vmatpush1.bf16.xpose.msra.mxu0 0
        %1384 = vmatprep.subr.bf16.mxu0 0
        %1385 = vmatpush1.bf16.xpose.msra.mxu0 0
        %1386 = vmatprep.subr.bf16.mxu0 0
        %1387 = vmatpush1.bf16.xpose.msra.mxu0 0
        %1388 = vmatprep.subr.bf16.mxu0 0
        %1389 = vmatpush1.bf16.xpose.msra.mxu0 0
        %1390 = vmatprep.subr.bf16.mxu0 0
        %1391 = vmatpush1.bf16.xpose.msra.mxu0 0
        %1392 = vmatprep.subr.bf16.mxu0 0
        %1393 = vmatpush1.bf16.xpose.msra.mxu0 0
        %1394 = vmatprep.subr.bf16.mxu0 0
        %1395 = vmatpush1.bf16.xpose.msra.mxu0 0
        %1396 = vmatprep.mubr.bf16.mxu0 0
        %1397 = vmatmul.mubr.bf16.gmra.mrb[0].mxu0 %v1359
        %v1398 = vpop.f32.mrb[0].mxu0
        %v1399 = vadd.f32 0.0, %v1398
        %v1400 = vpop.f32.mrb[0].mxu0
        %v1401 = vpop.f32.mrb[0].mxu0
        %v1402 = vpop.f32.mrb[0].mxu0
        %1403 = vdwg.mxu0
        %v1404 = vsel %vm1055, %v1399, -1e+30
        %v1405 = vsel %vm1006, %v1404, -inf
        %1406 = vmax.xlane.f32.xlu0 %v1405
        %v1407 = vpop.xlane.xlu0 %1406
        %v1408 = vsub.f32 %v1404, %v1407
        %v1409 = vmul.f32 %v1408, 1.442695
        %v1410 = vpow.pop %v1409
        %v1411 = vsel %vm1006, %v1410, 0.0
        %1412 = vadd.xlane.f32.xlu0 %v1411
        %v1413 = vpop.xlane.xlu0 %1412
        %v1414 = vrcp.pop %v1413
        %v1415 = vmul.f32 %v1410, %v1414
        %v1416 = vpack.c.bf16 %v1415, %v1415
        %1417 = vrot.lane.b32.xlu0 %v1005, 80
        %v1418 = vpop.permute.xlu0 %1417
        %v1421 = vsel %vm1006, %v1416, 0
        %1423 = vmatprep.subr.bf16.mxu0 0
        %1424 = vmatpush1.bf16.msra.mxu0 %v1418
        %1425 = vmatprep.subr.bf16.mxu0 0
        %1426 = vmatpush1.bf16.msra.mxu0 0
        %1427 = vmatprep.subr.bf16.mxu0 0
        %1428 = vmatpush1.bf16.msra.mxu0 0
        %1429 = vmatprep.subr.bf16.mxu0 0
        %1430 = vmatpush1.bf16.msra.mxu0 0
        %1431 = vmatprep.subr.bf16.mxu0 0
        %1432 = vmatpush1.bf16.msra.mxu0 0
        %1433 = vmatprep.subr.bf16.mxu0 0
        %1434 = vmatpush1.bf16.msra.mxu0 0
        %1435 = vmatprep.subr.bf16.mxu0 0
        %1436 = vmatpush1.bf16.msra.mxu0 0
        %1437 = vmatprep.subr.bf16.mxu0 0
        %1438 = vmatpush1.bf16.msra.mxu0 0
        %1439 = vmatprep.subr.bf16.mxu0 0
        %1440 = vmatpush1.bf16.msra.mxu0 0
        %1441 = vmatprep.subr.bf16.mxu0 0
        %1442 = vmatpush1.bf16.msra.mxu0 0
        %1443 = vmatprep.subr.bf16.mxu0 0
        %1444 = vmatpush1.bf16.msra.mxu0 0
        %1445 = vmatprep.subr.bf16.mxu0 0
        %1446 = vmatpush1.bf16.msra.mxu0 0
        %1447 = vmatprep.subr.bf16.mxu0 0
        %1448 = vmatpush1.bf16.msra.mxu0 0
        %1449 = vmatprep.subr.bf16.mxu0 0
        %1450 = vmatpush1.bf16.msra.mxu0 0
        %1451 = vmatprep.subr.bf16.mxu0 0
        %1452 = vmatpush1.bf16.msra.mxu0 0
        %1453 = vmatprep.subr.bf16.mxu0 0
        %1454 = vmatpush1.bf16.msra.mxu0 0
        %1455 = vmatprep.mubr.bf16.mxu0 0
        %1456 = vmatmul.mubr.bf16.gmra.mrb[0].mxu0 %v1421
        %v1457 = vpop.f32.mrb[0].mxu0
        %v1458 = vadd.f32 0.0, %v1457
        %v1459 = vpop.f32.mrb[0].mxu0
        %v1460 = vpop.f32.mrb[0].mxu0
        %v1461 = vpop.f32.mrb[0].mxu0
        %1462 = vdwg.mxu0
        %v1463 = vpack.c.bf16 %v1458, %v1458
        %v1465 = vunpack.c.l.b16 %v1463
        %v1466 = vpack.c.b16 %v1465, %v1465
        %1467 = vrot.lane.b32.xlu0 %v1466, 48
        %v1468 = vpop.permute.xlu0 %1467
        %vm1470 = vcmask 519552
        %1471 = vst.msk [vmem:[#allocation4] sm:$0xf] %vm1470, %v1468
        %v1472 = vld [vmem:[#allocation4] sm:$0xf]
        %v1473 = vld [vmem:[%s13] sm:$0xf]
        %v1474 = vld [vmem:[%s13 + $0x4] sm:$0xf]
        %v1475 = vld [vmem:[%s13 + $0x8] sm:$0xf]
        %v1476 = vld [vmem:[%s13 + $0xc] sm:$0xf]
        %v1477 = vld [vmem:[%s13 + $0x10] sm:$0xf]
        %v1478 = vld [vmem:[%s13 + $0x14] sm:$0xf]
        %v1479 = vld [vmem:[%s13 + $0x18] sm:$0xf]
        %v1480 = vld [vmem:[%s13 + $0x1c] sm:$0xf]
        %v1481 = vld [vmem:[%s14] sm:$0x1]
        %v1483 = vlaneseq
        %v1484 = vshrl.u32 %v1483, 7
        %v1485 = vsub.s32 0, %v1484
        %v1486 = vrot.slane %v1481, %v1485
        %v1496 = vunpack.c.l.b16 %v1473
        %v1497 = vunpack.c.l.b16 %v1474
        %v1498 = vunpack.c.l.b16 %v1475
        %v1499 = vunpack.c.l.b16 %v1476
        %v1500 = vunpack.c.l.b16 %v1477
        %v1501 = vunpack.c.l.b16 %v1478
        %v1502 = vunpack.c.l.b16 %v1479
        %v1503 = vunpack.c.l.b16 %v1480
        %v1504 = vpack.c.b16 %v1497, %v1496
        %v1505 = vpack.c.b16 %v1499, %v1498
        %v1506 = vpack.c.b16 %v1501, %v1500
        %v1507 = vpack.c.b16 %v1503, %v1502
        %vm1512 = vcmask 523264
        %v1514 = vsel %vm1512, %v1472, 0
        %1516 = vmatprep.subr.bf16.mxu0 0
        %1517 = vmatpush1.bf16.msra.mxu0 %v1504
        %1518 = vmatprep.subr.bf16.mxu0 0
        %1519 = vmatpush1.bf16.msra.mxu0 %v1505
        %1520 = vmatprep.subr.bf16.mxu0 0
        %1521 = vmatpush1.bf16.msra.mxu0 %v1506
        %1522 = vmatprep.subr.bf16.mxu0 0
        %1523 = vmatpush1.bf16.msra.mxu0 %v1507
        %1524 = vmatprep.subr.bf16.mxu0 0
        %1525 = vmatpush1.bf16.msra.mxu0 0
        %1526 = vmatprep.subr.bf16.mxu0 0
        %1527 = vmatpush1.bf16.msra.mxu0 0
        %1528 = vmatprep.subr.bf16.mxu0 0
        %1529 = vmatpush1.bf16.msra.mxu0 0
        %1530 = vmatprep.subr.bf16.mxu0 0
        %1531 = vmatpush1.bf16.msra.mxu0 0
        %1532 = vmatprep.subr.bf16.mxu0 0
        %1533 = vmatpush1.bf16.msra.mxu0 0
        %1534 = vmatprep.subr.bf16.mxu0 0
        %1535 = vmatpush1.bf16.msra.mxu0 0
        %1536 = vmatprep.subr.bf16.mxu0 0
        %1537 = vmatpush1.bf16.msra.mxu0 0
        %1538 = vmatprep.subr.bf16.mxu0 0
        %1539 = vmatpush1.bf16.msra.mxu0 0
        %1540 = vmatprep.subr.bf16.mxu0 0
        %1541 = vmatpush1.bf16.msra.mxu0 0
        %1542 = vmatprep.subr.bf16.mxu0 0
        %1543 = vmatpush1.bf16.msra.mxu0 0
        %1544 = vmatprep.subr.bf16.mxu0 0
        %1545 = vmatpush1.bf16.msra.mxu0 0
        %1546 = vmatprep.subr.bf16.mxu0 0
        %1547 = vmatpush1.bf16.msra.mxu0 0
        %1548 = vmatprep.mubr.bf16.mxu0 0
        %1549 = vmatmul.mubr.bf16.gmra.mrb[0].mxu0 %v1514
        %v1550 = vpop.f32.mrb[0].mxu0
        %v1551 = vadd.f32 %v1486, %v1550
        %v1552 = vpop.f32.mrb[0].mxu0
        %v1553 = vpop.f32.mrb[0].mxu0
        %v1554 = vpop.f32.mrb[0].mxu0
        %1555 = vdwg.mxu0
        %1556 = vst [vmem:[%s707] sm:$0xff] %v1551
        %s1557 = sand.u32 %s395, 1
        %s1558 = scalar_lea.sflag [#allocation7], %s1557
        %s1559 = sand.u32 %s395, 1
        %s1560 = smul.addr %s1559, 8
        %s1561 = scalar_lea.vmem [#allocation23], %s1560
        // Predicated region
        $region129: #{tpu_custom_call.1} parent=79 // pred_check
          %p1562 = pneg %p405
        $region130: #{tpu_custom_call.1} parent=79 // pred_check_branch
          %1564 = sbr.rel (%p1562) target = $region132
        $region131: #{tpu_custom_call.1} parent=79 // pred_region
          %s1566 = ssub.s32 128, 128
          %1567 = vsyncadd %s1558, %s1566
          %s1568 = sadd.s32 %s44, %s43
          %s1569 = smul.addr %s1568, 128
          %s1570 = scalar_lea.hbm %s15, %s1569
          %s1572 = sshll.u32 %s1561, 4
          %s1573 = int_to_ptr.vmem [resolvable:$true] %s1572
          %1575 = dma.vmem_to_hbm [thread:$0]  %s1573, 128, %s1570, %s1558
        $region132: #{tpu_custom_call.1} parent=79 // pred_fallthru
          _
      $region80: #{tpu_custom_call.1} parent=5 // pred_fallthru
        _
      %p1576 = scmp.le.s32.totalorder 2, %s34
      // Predicated region
      $region133: #{tpu_custom_call.1} parent=5 // pred_check
        %p1577 = pneg %p1576
      $region134: #{tpu_custom_call.1} parent=5 // pred_check_branch
        %1579 = sbr.rel (%p1577) target = $region136
      $region135: #{tpu_custom_call.1} parent=5 // pred_region
        %s1580 = ssub.s32 %s34, 2
        // Predicated region
        $region137: #{tpu_custom_call.1} parent=135 // pred_check
          %p1581 = pneg %p411
        $region138: #{tpu_custom_call.1} parent=135 // pred_check_branch
          %1583 = sbr.rel (%p1581) target = $region140
        $region139: #{tpu_custom_call.1} parent=135 // pred_region
          %s1584 = sand.u32 %s396, 1
          %s1585 = scalar_lea.sflag [#allocation7], %s1584
          %s1586 = sand.u32 %s396, 1
          %s1587 = smul.addr %s1586, 8
          %s1588 = scalar_lea.vmem [#allocation23], %s1587
          %1589 = dma.done %s1585, 128
        $region140: #{tpu_custom_call.1} parent=135 // pred_fallthru
          _
      $region136: #{tpu_custom_call.1} parent=5 // pred_fallthru
        _
    $region6: #{tpu_custom_call.1} parent=1 // loop_footer
      %s38 = sadd.s32 1, %s34
    $region7: #{tpu_custom_call.1} parent=1 // loop_footer_branch
      %33 = sbr.rel target = $region3
    $region8: #{tpu_custom_call.1} parent=1 // loop_exit
      _
    %1590 = vsyncpa [#allocation6], 1
    %s1591 = scalar_lea.sflag [#allocation6], 1
    %1592 = vsyncpa %s1591, 1
    %1593 = vsyncpa [#allocation9], 1
    %s1594 = scalar_lea.sflag [#allocation9], 1
    %1595 = vsyncpa %s1594, 1
    %1596 = vsyncpa [#allocation12], 1
    %1597 = vsyncpa [#allocation15], 1
    %1598 = vsyncpa [#allocation18], 1
    %1599 = vsyncpa [#allocation21], 1
    %1600 = vsyncpa [#allocation7], 1
    %s1601 = scalar_lea.sflag [#allocation7], 1
    %1602 = vsyncpa %s1601, 1

</llo_original>
